<compile_context>
chip_gen: v7x
topology: tpu7x:2x2x1
jax: 0.10.0
libtpu: 0.0.40
codegen_flags: <defaults>
</compile_context>

<pallas_src>
import jax
import jax.numpy as jnp
from jax.experimental import pallas as pl
from jax.experimental.pallas import tpu as pltpu


def _round_up(x, m):
    return ((x + m - 1) // m) * m


def _num_tensorcores():
    """Best-effort TensorCore count (2 on v7x, else 1).  Never raises."""
    try:
        info = pltpu.get_tpu_info()
    except Exception:
        return 1
    for name in ("num_cores", "core_count", "tensor_cores_per_chip",
                 "num_tensorcores", "cores_per_chip"):
        v = getattr(info, name, None)
        if isinstance(v, int) and 1 <= v <= 8:
            return v
    return 1


def critic_kernel(x_ref,
                  w1_ref, b1_ref,
                  w2_ref, b2_ref,
                  w3_ref, b3_ref,
                  w4_ref, b4_ref,
                  q_ref):
    cdt = w1_ref.dtype  # compute dtype for MXU operands (bf16 or f32)
    # fc1 (1/max_action already folded into W1's action rows) + relu
    h1 = jnp.dot(x_ref[...], w1_ref[...], preferred_element_type=jnp.float32)
    h1 = jnp.maximum(h1 + b1_ref[...], 0.0)
    # fc2 + relu
    h2 = jnp.dot(h1.astype(cdt), w2_ref[...], preferred_element_type=jnp.float32)
    h2 = jnp.maximum(h2 + b2_ref[...], 0.0)
    # fc3 + relu
    h3 = jnp.dot(h2.astype(cdt), w3_ref[...], preferred_element_type=jnp.float32)
    h3 = jnp.maximum(h3 + b3_ref[...], 0.0)
    # q_out: N=1 output -> VPU multiply + lane reduction instead of a
    # degenerate 1-column MXU matmul.  w4_ref is a (1, 32) f32 row.
    q = jnp.sum(h3 * w4_ref[...], axis=-1, keepdims=True) + b4_ref[...]
    q_ref[...] = q.astype(q_ref.dtype)


def critic_forward(state_list, action_list, params, max_action, *,
                   max_block_rows=1024, num_cores=None, use_bf16=True):
    """state_list/action_list: lists of (B, d_i) f32 arrays (one per agent)."""
    state = jnp.concatenate(state_list, axis=1).astype(jnp.float32)    # (B, Ds)
    action = jnp.concatenate(action_list, axis=1).astype(jnp.float32)  # (B, Da)
    B, Ds = state.shape
    Da = action.shape[1]
    D = Ds + Da

    w1, b1, w2, b2, w3, b3, w4, b4 = params
    # Fold the 1/max_action scale into W1's action rows (trace time, free).
    w1_eff = jnp.concatenate([w1[:Ds], w1[Ds:] * jnp.float32(1.0 / max_action)],
                             axis=0)
    w4r = w4.reshape(1, -1).astype(jnp.float32)   # (1, 32) row for VPU reduce
    b4s = b4.reshape(1, 1).astype(jnp.float32)    # (1, 1) scalar bias

    compute_dtype = jnp.bfloat16 if use_bf16 else jnp.float32
    x = jnp.concatenate([state, action], axis=1).astype(compute_dtype)  # (B, D)
    w1_eff = w1_eff.astype(compute_dtype)
    w2c = w2.astype(compute_dtype)
    w3c = w3.astype(compute_dtype)
    b1f = b1.astype(jnp.float32)
    b2f = b2.astype(jnp.float32)
    b3f = b3.astype(jnp.float32)

    # Grid sizing: as few steps as possible, a multiple of the TensorCore
    # count (even 2-way split on v7x), each block <= max_block_rows rows.
    if num_cores is None:
        num_cores = _num_tensorcores()
    b8 = _round_up(B, 8)
    grid = max(num_cores, pl.cdiv(b8, max_block_rows))
    grid = _round_up(grid, num_cores)
    tb = _round_up(pl.cdiv(B, grid), 8)
    b_pad = grid * tb
    if b_pad != B:
        x = jnp.pad(x, ((0, b_pad - B), (0, 0)))

    resident = lambda shape: pl.BlockSpec(shape, lambda i: (0, 0))

    q = pl.pallas_call(
        critic_kernel,
        out_shape=jax.ShapeDtypeStruct((b_pad, 1), jnp.float32),
        grid=(grid,),
        in_specs=[
            pl.BlockSpec((tb, D), lambda i: (i, 0)),    # streamed batch rows
            resident(w1_eff.shape),                     # W1 (scale pre-folded)
            resident(b1f.shape),
            resident(w2c.shape),
            resident(b2f.shape),
            resident(w3c.shape),
            resident(b3f.shape),
            resident(w4r.shape),
            resident(b4s.shape),
        ],
        out_specs=pl.BlockSpec((tb, 1), lambda i: (i, 0)),
        compiler_params=pltpu.CompilerParams(
            dimension_semantics=("parallel",)),
    )(x, w1_eff, b1f, w2c, b2f, w3c, b3f, w4r, b4s)
    return q[:B]


def init_params(key, in_dim):
    """Deterministic init mimicking nn.Linear default (uniform +/- 1/sqrt(fan_in)).
    Weights stored as (in, out); biases as (1, out)."""
    dims = [(in_dim, 128), (128, 64), (64, 32), (32, 1)]
    params = []
    for (fan_in, fan_out) in dims:
        key, kw, kb = jax.random.split(key, 3)
        bound = 1.0 / jnp.sqrt(float(fan_in))
        w = jax.random.uniform(kw, (fan_in, fan_out), jnp.float32, -bound, bound)
        b = jax.random.uniform(kb, (1, fan_out), jnp.float32, -bound, bound)
        params += [w, b]
    return params


def reference_forward(state_list, action_list, params, max_action):
    """Pure-JAX f32 reference for correctness check."""
    hp = jax.lax.Precision.HIGHEST
    state = jnp.concatenate(state_list, axis=1)
    action = jnp.concatenate(action_list, axis=1) / max_action
    x = jnp.concatenate([state, action], axis=1)
    w1, b1, w2, b2, w3, b3, w4, b4 = params
    x = jnp.maximum(jnp.dot(x, w1, precision=hp) + b1, 0.0)
    x = jnp.maximum(jnp.dot(x, w2, precision=hp) + b2, 0.0)
    x = jnp.maximum(jnp.dot(x, w3, precision=hp) + b3, 0.0)
    return jnp.dot(x, w4, precision=hp) + b4


if __name__ == "__main__":
    # Small synthetic MADDPG setup: 3 agents, obs dims [10,10,10], act dims [2,2,2].
    obs_shape = [10, 10, 10]
    action_shape = [2, 2, 2]
    max_action = 2.0
    batch = 600                       # not a multiple of 8 blocks -> exercises padding
    in_dim = sum(obs_shape) + sum(action_shape)   # 36

    key = jax.random.PRNGKey(0)
    key, pkey, *ks = jax.random.split(key, 2 + len(obs_shape) + len(action_shape))
    state_list = [jax.random.normal(ks[i], (batch, d), jnp.float32)
                  for i, d in enumerate(obs_shape)]
    action_list = [jax.random.normal(ks[len(obs_shape) + i], (batch, d), jnp.float32)
                   for i, d in enumerate(action_shape)]

    params = init_params(pkey, in_dim)
    q_ref = reference_forward(state_list, action_list, params, max_action)

    # f32 path: exact-ish check.
    q_f32 = critic_forward(state_list, action_list, params, max_action,
                           use_bf16=False)
    q_f32 = jax.block_until_ready(q_f32)
    assert q_f32.shape == (batch, 1)
    assert jnp.allclose(q_f32, q_ref, atol=2e-4, rtol=2e-4), "f32 mismatch vs reference"

    # bf16-operand / f32-accumulate path: loosened tolerance (bf16 mantissa).
    q_bf16 = critic_forward(state_list, action_list, params, max_action,
                            use_bf16=True)
    q_bf16 = jax.block_until_ready(q_bf16)
    assert q_bf16.shape == (batch, 1)
    assert jnp.allclose(q_bf16, q_ref, atol=5e-2, rtol=5e-2), "bf16 mismatch vs reference"

    print("KERNEL_OK")
</pallas_src>

<mosaic_0001>
module attributes {stable_mosaic.version = 11 : i64} {
  func.func @critic_kernel(%arg0: i32, %arg1: memref<600x36xf32, #tpu.memory_space<vmem>>, %arg2: memref<36x128xf32, #tpu.memory_space<vmem>>, %arg3: memref<1x128xf32, #tpu.memory_space<vmem>>, %arg4: memref<128x64xf32, #tpu.memory_space<vmem>>, %arg5: memref<1x64xf32, #tpu.memory_space<vmem>>, %arg6: memref<64x32xf32, #tpu.memory_space<vmem>>, %arg7: memref<1x32xf32, #tpu.memory_space<vmem>>, %arg8: memref<1x32xf32, #tpu.memory_space<vmem>>, %arg9: memref<1x1xf32, #tpu.memory_space<vmem>>, %arg10: memref<600x1xf32, #tpu.memory_space<vmem>>) attributes {dimension_semantics = [#tpu.dimension_semantics<parallel>], iteration_bounds = array<i64: 1>, scalar_prefetch = 0 : i64, scratch_operands = 0 : i64, tpu.core_type = #tpu.core_type<tc>, window_params = [{transform_indices = @transform_0, window_bounds = array<i64: 600, 36>}, {pipeline_mode = #tpu.pipeline_mode<synchronous>, transform_indices = @transform_1, window_bounds = array<i64: 36, 128>}, {pipeline_mode = #tpu.pipeline_mode<synchronous>, transform_indices = @transform_2, window_bounds = array<i64: 1, 128>}, {pipeline_mode = #tpu.pipeline_mode<synchronous>, transform_indices = @transform_3, window_bounds = array<i64: 128, 64>}, {pipeline_mode = #tpu.pipeline_mode<synchronous>, transform_indices = @transform_4, window_bounds = array<i64: 1, 64>}, {pipeline_mode = #tpu.pipeline_mode<synchronous>, transform_indices = @transform_5, window_bounds = array<i64: 64, 32>}, {pipeline_mode = #tpu.pipeline_mode<synchronous>, transform_indices = @transform_6, window_bounds = array<i64: 1, 32>}, {pipeline_mode = #tpu.pipeline_mode<synchronous>, transform_indices = @transform_7, window_bounds = array<i64: 1, 32>}, {pipeline_mode = #tpu.pipeline_mode<synchronous>, transform_indices = @transform_8, window_bounds = array<i64: 1, 1>}, {transform_indices = @transform_9, window_bounds = array<i64: 600, 1>}]} {
    %c0 = arith.constant 0 : index
    %c0_0 = arith.constant 0 : index
    %0 = vector.load %arg1[%c0, %c0_0] : memref<600x36xf32, #tpu.memory_space<vmem>>, vector<600x36xf32>
    %c0_1 = arith.constant 0 : index
    %c0_2 = arith.constant 0 : index
    %1 = vector.load %arg2[%c0_1, %c0_2] : memref<36x128xf32, #tpu.memory_space<vmem>>, vector<36x128xf32>
    %cst = arith.constant dense<0.000000e+00> : vector<600x128xf32>
    %2 = tpu.matmul %0, %1, %cst {dimension_numbers = #tpu.dot_dimension_numbers<[1], [0], [0], [1], [0, 0, 1, 1], [], []>} : vector<600x36xf32>, vector<36x128xf32>, vector<600x128xf32> -> vector<600x128xf32>
    %c0_3 = arith.constant 0 : index
    %c0_4 = arith.constant 0 : index
    %3 = vector.load %arg3[%c0_3, %c0_4] : memref<1x128xf32, #tpu.memory_space<vmem>>, vector<1x128xf32>
    %4 = vector.broadcast %3 : vector<1x128xf32> to vector<600x128xf32>
    %5 = arith.addf %2, %4 : vector<600x128xf32>
    %cst_5 = arith.constant 0.000000e+00 : f32
    %6 = vector.broadcast %cst_5 : f32 to vector<600x128xf32>
    %7 = arith.maximumf %5, %6 : vector<600x128xf32>
    %c0_6 = arith.constant 0 : index
    %c0_7 = arith.constant 0 : index
    %8 = vector.load %arg4[%c0_6, %c0_7] : memref<128x64xf32, #tpu.memory_space<vmem>>, vector<128x64xf32>
    %cst_8 = arith.constant dense<0.000000e+00> : vector<600x64xf32>
    %9 = tpu.matmul %7, %8, %cst_8 {dimension_numbers = #tpu.dot_dimension_numbers<[1], [0], [0], [1], [0, 0, 1, 1], [], []>} : vector<600x128xf32>, vector<128x64xf32>, vector<600x64xf32> -> vector<600x64xf32>
    %c0_9 = arith.constant 0 : index
    %c0_10 = arith.constant 0 : index
    %10 = vector.load %arg5[%c0_9, %c0_10] : memref<1x64xf32, #tpu.memory_space<vmem>>, vector<1x64xf32>
    %11 = vector.broadcast %10 : vector<1x64xf32> to vector<600x64xf32>
    %12 = arith.addf %9, %11 : vector<600x64xf32>
    %cst_11 = arith.constant 0.000000e+00 : f32
    %13 = vector.broadcast %cst_11 : f32 to vector<600x64xf32>
    %14 = arith.maximumf %12, %13 : vector<600x64xf32>
    %c0_12 = arith.constant 0 : index
    %c0_13 = arith.constant 0 : index
    %15 = vector.load %arg6[%c0_12, %c0_13] : memref<64x32xf32, #tpu.memory_space<vmem>>, vector<64x32xf32>
    %cst_14 = arith.constant dense<0.000000e+00> : vector<600x32xf32>
    %16 = tpu.matmul %14, %15, %cst_14 {dimension_numbers = #tpu.dot_dimension_numbers<[1], [0], [0], [1], [0, 0, 1, 1], [], []>} : vector<600x64xf32>, vector<64x32xf32>, vector<600x32xf32> -> vector<600x32xf32>
    %c0_15 = arith.constant 0 : index
    %c0_16 = arith.constant 0 : index
    %17 = vector.load %arg7[%c0_15, %c0_16] : memref<1x32xf32, #tpu.memory_space<vmem>>, vector<1x32xf32>
    %18 = vector.broadcast %17 : vector<1x32xf32> to vector<600x32xf32>
    %19 = arith.addf %16, %18 : vector<600x32xf32>
    %cst_17 = arith.constant 0.000000e+00 : f32
    %20 = vector.broadcast %cst_17 : f32 to vector<600x32xf32>
    %21 = arith.maximumf %19, %20 : vector<600x32xf32>
    %c0_18 = arith.constant 0 : index
    %c0_19 = arith.constant 0 : index
    %22 = vector.load %arg8[%c0_18, %c0_19] : memref<1x32xf32, #tpu.memory_space<vmem>>, vector<1x32xf32>
    %23 = vector.broadcast %22 : vector<1x32xf32> to vector<600x32xf32>
    %24 = arith.mulf %21, %23 : vector<600x32xf32>
    %cst_20 = arith.constant dense<0.000000e+00> : vector<600xf32>
    %25 = vector.multi_reduction <add>, %24, %cst_20 [1] : vector<600x32xf32> to vector<600xf32>
    %26 = vector.shape_cast %25 : vector<600xf32> to vector<600x1xf32>
    %c0_21 = arith.constant 0 : index
    %c0_22 = arith.constant 0 : index
    %27 = vector.load %arg9[%c0_21, %c0_22] : memref<1x1xf32, #tpu.memory_space<vmem>>, vector<1x1xf32>
    %28 = vector.broadcast %27 : vector<1x1xf32> to vector<600x1xf32>
    %29 = arith.addf %26, %28 : vector<600x1xf32>
    %c0_23 = arith.constant 0 : index
    %c0_24 = arith.constant 0 : index
    %30 = vector.load %arg10[%c0_23, %c0_24] : memref<600x1xf32, #tpu.memory_space<vmem>>, vector<600x1xf32>
    tpu.vector_store %arg10[%c0_23, %c0_24], %29 {strides = array<i32>} : memref<600x1xf32, #tpu.memory_space<vmem>>, vector<600x1xf32>,
    return
  }
  func.func @transform_0(%arg0: i32) -> (i32, i32) {
    %c0_i32 = arith.constant 0 : i32
    %c0_i32_0 = arith.constant 0 : i32
    return %arg0, %c0_i32 : i32, i32
  }
  func.func @transform_1(%arg0: i32) -> (i32, i32) {
    %c0_i32 = arith.constant 0 : i32
    %c0_i32_0 = arith.constant 0 : i32
    %c0_i32_1 = arith.constant 0 : i32
    return %c0_i32, %c0_i32_0 : i32, i32
  }
  func.func @transform_2(%arg0: i32) -> (i32, i32) {
    %c0_i32 = arith.constant 0 : i32
    %c0_i32_0 = arith.constant 0 : i32
    %c0_i32_1 = arith.constant 0 : i32
    return %c0_i32, %c0_i32_0 : i32, i32
  }
  func.func @transform_3(%arg0: i32) -> (i32, i32) {
    %c0_i32 = arith.constant 0 : i32
    %c0_i32_0 = arith.constant 0 : i32
    %c0_i32_1 = arith.constant 0 : i32
    return %c0_i32, %c0_i32_0 : i32, i32
  }
  func.func @transform_4(%arg0: i32) -> (i32, i32) {
    %c0_i32 = arith.constant 0 : i32
    %c0_i32_0 = arith.constant 0 : i32
    %c0_i32_1 = arith.constant 0 : i32
    return %c0_i32, %c0_i32_0 : i32, i32
  }
  func.func @transform_5(%arg0: i32) -> (i32, i32) {
    %c0_i32 = arith.constant 0 : i32
    %c0_i32_0 = arith.constant 0 : i32
    %c0_i32_1 = arith.constant 0 : i32
    return %c0_i32, %c0_i32_0 : i32, i32
  }
  func.func @transform_6(%arg0: i32) -> (i32, i32) {
    %c0_i32 = arith.constant 0 : i32
    %c0_i32_0 = arith.constant 0 : i32
    %c0_i32_1 = arith.constant 0 : i32
    return %c0_i32, %c0_i32_0 : i32, i32
  }
  func.func @transform_7(%arg0: i32) -> (i32, i32) {
    %c0_i32 = arith.constant 0 : i32
    %c0_i32_0 = arith.constant 0 : i32
    %c0_i32_1 = arith.constant 0 : i32
    return %c0_i32, %c0_i32_0 : i32, i32
  }
  func.func @transform_8(%arg0: i32) -> (i32, i32) {
    %c0_i32 = arith.constant 0 : i32
    %c0_i32_0 = arith.constant 0 : i32
    %c0_i32_1 = arith.constant 0 : i32
    return %c0_i32, %c0_i32_0 : i32, i32
  }
  func.func @transform_9(%arg0: i32) -> (i32, i32) {
    %c0_i32 = arith.constant 0 : i32
    %c0_i32_0 = arith.constant 0 : i32
    return %arg0, %c0_i32 : i32, i32
  }
}

</mosaic_0001>

<llo_original>
// kernel: tpu_custom_call.1
$region0: #{tpu_custom_call.1}
  #allocation0 [shape = 'u32[]', space=smem, size = 0x4, offset = 0x4, fixed_abs, tag = 'smem constant byte address 0x4 - core index']
  #allocation1 [shape = 'u32[144,128]{1,0:T(1,128)}', space=vmem, size = 0x12000, scoped, tag = 'internal scratch']
  #allocation2 [shape = 'f32[1,1]{1,0:T(1,128)S(1)}', space=vmem, size = 0x200, scoped, tag = 'scoped memory for tpu_custom_call.1']
  %s0 = inlined_call_operand.vmem [shape: f32[600,36], index: 0, kind: input, shape index: {}]
  %s1 = inlined_call_operand.vmem [shape: f32[36,128], index: 1, kind: input, shape index: {}]
  %s2 = inlined_call_operand.vmem [shape: f32[1,128], index: 2, kind: input, shape index: {}]
  %s3 = inlined_call_operand.vmem [shape: f32[128,64], index: 3, kind: input, shape index: {}]
  %s4 = inlined_call_operand.vmem [shape: f32[1,64], index: 4, kind: input, shape index: {}]
  %s5 = inlined_call_operand.vmem [shape: f32[64,32], index: 5, kind: input, shape index: {}]
  %s6 = inlined_call_operand.vmem [shape: f32[1,32], index: 6, kind: input, shape index: {}]
  %s7 = inlined_call_operand.vmem [shape: f32[1,32], index: 7, kind: input, shape index: {}]
  %s8 = inlined_call_operand.<no memory space> [shape: f32[1,1], index: 8, kind: input, shape index: {}]
  %s9 = inlined_call_operand.vmem [shape: f32[600,1], index: 9, kind: output, shape index: {}]
  %s10 = sld [smem:[#allocation0]]
  $region46: #{tpu_custom_call.1} parent=0
    _
  %s12 = ssub.s32 1, %s10
  %s13 = scalar_select 0, %s12, %s10
  %v14 = vstv %s8
  %15 = vst [vmem:[#allocation2] sm:$0x1] %v14
  // Predicated region
  $region2: #{tpu_custom_call.1} parent=0 // pred_check
    _
  $region3: #{tpu_custom_call.1} parent=0 // pred_check_branch
    %17 = sbr.rel (0) target = $region5
  $region4: #{tpu_custom_call.1} parent=0 // pred_region
    _
  $region5: #{tpu_custom_call.1} parent=0 // pred_fallthru
    _
  // Predicated region
  $region6: #{tpu_custom_call.1} parent=0 // pred_check
    _
  $region7: #{tpu_custom_call.1} parent=0 // pred_check_branch
    %19 = sbr.rel (0) target = $region9
  $region8: #{tpu_custom_call.1} parent=0 // pred_region
    _
  $region9: #{tpu_custom_call.1} parent=0 // pred_fallthru
    _
  // Predicated region
  $region10: #{tpu_custom_call.1} parent=0 // pred_check
    _
  $region11: #{tpu_custom_call.1} parent=0 // pred_check_branch
    %21 = sbr.rel (0) target = $region13
  $region12: #{tpu_custom_call.1} parent=0 // pred_region
    _
  $region13: #{tpu_custom_call.1} parent=0 // pred_fallthru
    _
  // Predicated region
  $region14: #{tpu_custom_call.1} parent=0 // pred_check
    _
  $region15: #{tpu_custom_call.1} parent=0 // pred_check_branch
    %23 = sbr.rel (0) target = $region17
  $region16: #{tpu_custom_call.1} parent=0 // pred_region
    _
  $region17: #{tpu_custom_call.1} parent=0 // pred_fallthru
    _
  // Predicated region
  $region18: #{tpu_custom_call.1} parent=0 // pred_check
    _
  $region19: #{tpu_custom_call.1} parent=0 // pred_check_branch
    %25 = sbr.rel (0) target = $region21
  $region20: #{tpu_custom_call.1} parent=0 // pred_region
    _
  $region21: #{tpu_custom_call.1} parent=0 // pred_fallthru
    _
  // Predicated region
  $region22: #{tpu_custom_call.1} parent=0 // pred_check
    _
  $region23: #{tpu_custom_call.1} parent=0 // pred_check_branch
    %27 = sbr.rel (0) target = $region25
  $region24: #{tpu_custom_call.1} parent=0 // pred_region
    _
  $region25: #{tpu_custom_call.1} parent=0 // pred_fallthru
    _
  // Predicated region
  $region26: #{tpu_custom_call.1} parent=0 // pred_check
    _
  $region27: #{tpu_custom_call.1} parent=0 // pred_check_branch
    %29 = sbr.rel (0) target = $region29
  $region28: #{tpu_custom_call.1} parent=0 // pred_region
    _
  $region29: #{tpu_custom_call.1} parent=0 // pred_fallthru
    _
  // Predicated region
  $region30: #{tpu_custom_call.1} parent=0 // pred_check
    _
  $region31: #{tpu_custom_call.1} parent=0 // pred_check_branch
    %31 = sbr.rel (0) target = $region33
  $region32: #{tpu_custom_call.1} parent=0 // pred_region
    _
  $region33: #{tpu_custom_call.1} parent=0 // pred_fallthru
    _
  // Predicated region
  $region34: #{tpu_custom_call.1} parent=0 // pred_check
    _
  $region35: #{tpu_custom_call.1} parent=0 // pred_check_branch
    %33 = sbr.rel (0) target = $region37
  $region36: #{tpu_custom_call.1} parent=0 // pred_region
    _
  $region37: #{tpu_custom_call.1} parent=0 // pred_fallthru
    _
  %v34 = vld [vmem:[%s0] sm:$0xff]
  %v35 = vld [vmem:[%s0 + $0x8] sm:$0xff]
  %v36 = vld [vmem:[%s0 + $0x10] sm:$0xff]
  %v37 = vld [vmem:[%s0 + $0x18] sm:$0xff]
  %v38 = vld [vmem:[%s0 + $0x20] sm:$0xff]
  %v39 = vld [vmem:[%s0 + $0x28] sm:$0xff]
  %v40 = vld [vmem:[%s0 + $0x30] sm:$0xff]
  %v41 = vld [vmem:[%s0 + $0x38] sm:$0xff]
  %v42 = vld [vmem:[%s0 + $0x40] sm:$0xff]
  %v43 = vld [vmem:[%s0 + $0x48] sm:$0xff]
  %v44 = vld [vmem:[%s0 + $0x50] sm:$0xff]
  %v45 = vld [vmem:[%s0 + $0x58] sm:$0xff]
  %v46 = vld [vmem:[%s0 + $0x60] sm:$0xff]
  %v47 = vld [vmem:[%s0 + $0x68] sm:$0xff]
  %v48 = vld [vmem:[%s0 + $0x70] sm:$0xff]
  %v49 = vld [vmem:[%s0 + $0x78] sm:$0xff]
  %v50 = vld [vmem:[%s0 + $0x80] sm:$0xff]
  %v51 = vld [vmem:[%s0 + $0x88] sm:$0xff]
  %v52 = vld [vmem:[%s0 + $0x90] sm:$0xff]
  %v53 = vld [vmem:[%s0 + $0x98] sm:$0xff]
  %v54 = vld [vmem:[%s0 + $0xa0] sm:$0xff]
  %v55 = vld [vmem:[%s0 + $0xa8] sm:$0xff]
  %v56 = vld [vmem:[%s0 + $0xb0] sm:$0xff]
  %v57 = vld [vmem:[%s0 + $0xb8] sm:$0xff]
  %v58 = vld [vmem:[%s0 + $0xc0] sm:$0xff]
  %v59 = vld [vmem:[%s0 + $0xc8] sm:$0xff]
  %v60 = vld [vmem:[%s0 + $0xd0] sm:$0xff]
  %v61 = vld [vmem:[%s0 + $0xd8] sm:$0xff]
  %v62 = vld [vmem:[%s0 + $0xe0] sm:$0xff]
  %v63 = vld [vmem:[%s0 + $0xe8] sm:$0xff]
  %v64 = vld [vmem:[%s0 + $0xf0] sm:$0xff]
  %v65 = vld [vmem:[%s0 + $0xf8] sm:$0xff]
  %v66 = vld [vmem:[%s0 + $0x100] sm:$0xff]
  %v67 = vld [vmem:[%s0 + $0x108] sm:$0xff]
  %v68 = vld [vmem:[%s0 + $0x110] sm:$0xff]
  %v69 = vld [vmem:[%s0 + $0x118] sm:$0xff]
  %v70 = vld [vmem:[%s0 + $0x120] sm:$0xff]
  %v71 = vld [vmem:[%s0 + $0x128] sm:$0xff]
  %v72 = vld [vmem:[%s0 + $0x130] sm:$0xff]
  %v73 = vld [vmem:[%s0 + $0x138] sm:$0xff]
  %v74 = vld [vmem:[%s0 + $0x140] sm:$0xff]
  %v75 = vld [vmem:[%s0 + $0x148] sm:$0xff]
  %v76 = vld [vmem:[%s0 + $0x150] sm:$0xff]
  %v77 = vld [vmem:[%s0 + $0x158] sm:$0xff]
  %v78 = vld [vmem:[%s0 + $0x160] sm:$0xff]
  %v79 = vld [vmem:[%s0 + $0x168] sm:$0xff]
  %v80 = vld [vmem:[%s0 + $0x170] sm:$0xff]
  %v81 = vld [vmem:[%s0 + $0x178] sm:$0xff]
  %v82 = vld [vmem:[%s0 + $0x180] sm:$0xff]
  %v83 = vld [vmem:[%s0 + $0x188] sm:$0xff]
  %v84 = vld [vmem:[%s0 + $0x190] sm:$0xff]
  %v85 = vld [vmem:[%s0 + $0x198] sm:$0xff]
  %v86 = vld [vmem:[%s0 + $0x1a0] sm:$0xff]
  %v87 = vld [vmem:[%s0 + $0x1a8] sm:$0xff]
  %v88 = vld [vmem:[%s0 + $0x1b0] sm:$0xff]
  %v89 = vld [vmem:[%s0 + $0x1b8] sm:$0xff]
  %v90 = vld [vmem:[%s0 + $0x1c0] sm:$0xff]
  %v91 = vld [vmem:[%s0 + $0x1c8] sm:$0xff]
  %v92 = vld [vmem:[%s0 + $0x1d0] sm:$0xff]
  %v93 = vld [vmem:[%s0 + $0x1d8] sm:$0xff]
  %v94 = vld [vmem:[%s0 + $0x1e0] sm:$0xff]
  %v95 = vld [vmem:[%s0 + $0x1e8] sm:$0xff]
  %v96 = vld [vmem:[%s0 + $0x1f0] sm:$0xff]
  %v97 = vld [vmem:[%s0 + $0x1f8] sm:$0xff]
  %v98 = vld [vmem:[%s0 + $0x200] sm:$0xff]
  %v99 = vld [vmem:[%s0 + $0x208] sm:$0xff]
  %v100 = vld [vmem:[%s0 + $0x210] sm:$0xff]
  %v101 = vld [vmem:[%s0 + $0x218] sm:$0xff]
  %v102 = vld [vmem:[%s0 + $0x220] sm:$0xff]
  %v103 = vld [vmem:[%s0 + $0x228] sm:$0xff]
  %v104 = vld [vmem:[%s0 + $0x230] sm:$0xff]
  %v105 = vld [vmem:[%s0 + $0x238] sm:$0xff]
  %v106 = vld [vmem:[%s0 + $0x240] sm:$0xff]
  %v107 = vld [vmem:[%s0 + $0x248] sm:$0xff]
  %v108 = vld [vmem:[%s0 + $0x250] sm:$0xff]
  %v109 = vld [vmem:[%s1] sm:$0xff]
  %v110 = vld [vmem:[%s1 + $0x8] sm:$0xff]
  %v111 = vld [vmem:[%s1 + $0x10] sm:$0xff]
  %v112 = vld [vmem:[%s1 + $0x18] sm:$0xff]
  %v113 = vld [vmem:[%s1 + $0x20] sm:$0xf]
  %v114 = vld [vmem:[%s2] sm:$0x1]
  %v116 = vlaneseq
  %v117 = vshrl.u32 %v116, 7
  %v118 = vsub.s32 0, %v117
  %v119 = vrot.slane %v114, %v118
  %vm121 = vcmask 293888
  %v123 = vsel %vm121, %v34, 0
  %v126 = vsel %vm121, %v35, 0
  %v129 = vsel %vm121, %v36, 0
  %v132 = vsel %vm121, %v37, 0
  %v135 = vsel %vm121, %v38, 0
  %v138 = vsel %vm121, %v39, 0
  %v141 = vsel %vm121, %v40, 0
  %v144 = vsel %vm121, %v41, 0
  %v147 = vsel %vm121, %v42, 0
  %v150 = vsel %vm121, %v43, 0
  %v153 = vsel %vm121, %v44, 0
  %v156 = vsel %vm121, %v45, 0
  %v159 = vsel %vm121, %v46, 0
  %v162 = vsel %vm121, %v47, 0
  %v165 = vsel %vm121, %v48, 0
  %v168 = vsel %vm121, %v49, 0
  %v171 = vsel %vm121, %v50, 0
  %v174 = vsel %vm121, %v51, 0
  %v177 = vsel %vm121, %v52, 0
  %v180 = vsel %vm121, %v53, 0
  %v183 = vsel %vm121, %v54, 0
  %v186 = vsel %vm121, %v55, 0
  %v189 = vsel %vm121, %v56, 0
  %v192 = vsel %vm121, %v57, 0
  %v195 = vsel %vm121, %v58, 0
  %v198 = vsel %vm121, %v59, 0
  %v201 = vsel %vm121, %v60, 0
  %v204 = vsel %vm121, %v61, 0
  %v207 = vsel %vm121, %v62, 0
  %v210 = vsel %vm121, %v63, 0
  %v213 = vsel %vm121, %v64, 0
  %v216 = vsel %vm121, %v65, 0
  %v219 = vsel %vm121, %v66, 0
  %v222 = vsel %vm121, %v67, 0
  %v225 = vsel %vm121, %v68, 0
  %v228 = vsel %vm121, %v69, 0
  %v231 = vsel %vm121, %v70, 0
  %v234 = vsel %vm121, %v71, 0
  %v237 = vsel %vm121, %v72, 0
  %v240 = vsel %vm121, %v73, 0
  %v243 = vsel %vm121, %v74, 0
  %v246 = vsel %vm121, %v75, 0
  %v249 = vsel %vm121, %v76, 0
  %v252 = vsel %vm121, %v77, 0
  %v255 = vsel %vm121, %v78, 0
  %v258 = vsel %vm121, %v79, 0
  %v261 = vsel %vm121, %v80, 0
  %v264 = vsel %vm121, %v81, 0
  %v267 = vsel %vm121, %v82, 0
  %v270 = vsel %vm121, %v83, 0
  %v273 = vsel %vm121, %v84, 0
  %v276 = vsel %vm121, %v85, 0
  %v279 = vsel %vm121, %v86, 0
  %v282 = vsel %vm121, %v87, 0
  %v285 = vsel %vm121, %v88, 0
  %v288 = vsel %vm121, %v89, 0
  %v291 = vsel %vm121, %v90, 0
  %v294 = vsel %vm121, %v91, 0
  %v297 = vsel %vm121, %v92, 0
  %v300 = vsel %vm121, %v93, 0
  %v303 = vsel %vm121, %v94, 0
  %v306 = vsel %vm121, %v95, 0
  %v309 = vsel %vm121, %v96, 0
  %v312 = vsel %vm121, %v97, 0
  %v315 = vsel %vm121, %v98, 0
  %v318 = vsel %vm121, %v99, 0
  %v321 = vsel %vm121, %v100, 0
  %v324 = vsel %vm121, %v101, 0
  %v327 = vsel %vm121, %v102, 0
  %v330 = vsel %vm121, %v103, 0
  %v333 = vsel %vm121, %v104, 0
  %v336 = vsel %vm121, %v105, 0
  %v339 = vsel %vm121, %v106, 0
  %v342 = vsel %vm121, %v107, 0
  %v345 = vsel %vm121, %v108, 0
  %vm347 = vcmask 1043456
  %v349 = vsel %vm347, %v113, 0
  %351 = vmatprep.subr.mxu0 0.0
  %352 = vmatpush1.msra.mxu0 %v109
  %353 = vmatprep.subr.mxu0 0.0
  %354 = vmatpush1.msra.mxu0 %v110
  %355 = vmatprep.subr.mxu0 0.0
  %356 = vmatpush1.msra.mxu0 %v111
  %357 = vmatprep.subr.mxu0 0.0
  %358 = vmatpush1.msra.mxu0 %v112
  %359 = vmatprep.subr.mxu0 0.0
  %360 = vmatpush1.msra.mxu0 %v349
  %361 = vmatprep.subr.mxu0 0.0
  %362 = vmatpush1.msra.mxu0 0.0
  %363 = vmatprep.subr.mxu0 0.0
  %364 = vmatpush1.msra.mxu0 0.0
  %365 = vmatprep.subr.mxu0 0.0
  %366 = vmatpush1.msra.mxu0 0.0
  %367 = vmatprep.subr.mxu0 0.0
  %368 = vmatpush1.msra.mxu0 0.0
  %369 = vmatprep.subr.mxu0 0.0
  %370 = vmatpush1.msra.mxu0 0.0
  %371 = vmatprep.subr.mxu0 0.0
  %372 = vmatpush1.msra.mxu0 0.0
  %373 = vmatprep.subr.mxu0 0.0
  %374 = vmatpush1.msra.mxu0 0.0
  %375 = vmatprep.subr.mxu0 0.0
  %376 = vmatpush1.msra.mxu0 0.0
  %377 = vmatprep.subr.mxu0 0.0
  %378 = vmatpush1.msra.mxu0 0.0
  %379 = vmatprep.subr.mxu0 0.0
  %380 = vmatpush1.msra.mxu0 0.0
  %381 = vmatprep.subr.mxu0 0.0
  %382 = vmatpush1.msra.mxu0 0.0
  %383 = vmatprep.subr.mxu0 0.0
  %384 = vmatpush1.msra.mxu0 0.0
  %385 = vmatprep.subr.mxu0 0.0
  %386 = vmatpush1.msra.mxu0 0.0
  %387 = vmatprep.subr.mxu0 0.0
  %388 = vmatpush1.msra.mxu0 0.0
  %389 = vmatprep.subr.mxu0 0.0
  %390 = vmatpush1.msra.mxu0 0.0
  %391 = vmatprep.subr.mxu0 0.0
  %392 = vmatpush1.msra.mxu0 0.0
  %393 = vmatprep.subr.mxu0 0.0
  %394 = vmatpush1.msra.mxu0 0.0
  %395 = vmatprep.subr.mxu0 0.0
  %396 = vmatpush1.msra.mxu0 0.0
  %397 = vmatprep.subr.mxu0 0.0
  %398 = vmatpush1.msra.mxu0 0.0
  %399 = vmatprep.subr.mxu0 0.0
  %400 = vmatpush1.msra.mxu0 0.0
  %401 = vmatprep.subr.mxu0 0.0
  %402 = vmatpush1.msra.mxu0 0.0
  %403 = vmatprep.subr.mxu0 0.0
  %404 = vmatpush1.msra.mxu0 0.0
  %405 = vmatprep.subr.mxu0 0.0
  %406 = vmatpush1.msra.mxu0 0.0
  %407 = vmatprep.subr.mxu0 0.0
  %408 = vmatpush1.msra.mxu0 0.0
  %409 = vmatprep.subr.mxu0 0.0
  %410 = vmatpush1.msra.mxu0 0.0
  %411 = vmatprep.subr.mxu0 0.0
  %412 = vmatpush1.msra.mxu0 0.0
  %413 = vmatprep.subr.mxu0 0.0
  %414 = vmatpush1.msra.mxu0 0.0
  %415 = vmatprep.mubr.f32.mxu0 0.0
  %416 = vmatmul.mubr.f32.gmra.mrb[0].mxu0 %v123
  %v417 = vpop.f32.mrb[0].mxu0
  %v418 = vadd.f32 %v119, %v417
  %v419 = vpop.f32.mrb[0].mxu0
  %420 = vmatprep.mubr.f32.mxu0 0.0
  %421 = vmatmul.mubr.f32.gmra.mrb[0].mxu0 %v126
  %v422 = vpop.f32.mrb[0].mxu0
  %v423 = vadd.f32 %v119, %v422
  %v424 = vpop.f32.mrb[0].mxu0
  %425 = vmatprep.mubr.f32.mxu0 0.0
  %426 = vmatmul.mubr.f32.gmra.mrb[0].mxu0 %v129
  %v427 = vpop.f32.mrb[0].mxu0
  %v428 = vadd.f32 %v119, %v427
  %v429 = vpop.f32.mrb[0].mxu0
  %430 = vmatprep.mubr.f32.mxu0 0.0
  %431 = vmatmul.mubr.f32.gmra.mrb[0].mxu0 %v132
  %v432 = vpop.f32.mrb[0].mxu0
  %v433 = vadd.f32 %v119, %v432
  %v434 = vpop.f32.mrb[0].mxu0
  %435 = vmatprep.mubr.f32.mxu0 0.0
  %436 = vmatmul.mubr.f32.gmra.mrb[0].mxu0 %v135
  %v437 = vpop.f32.mrb[0].mxu0
  %v438 = vadd.f32 %v119, %v437
  %v439 = vpop.f32.mrb[0].mxu0
  %440 = vmatprep.mubr.f32.mxu0 0.0
  %441 = vmatmul.mubr.f32.gmra.mrb[0].mxu0 %v138
  %v442 = vpop.f32.mrb[0].mxu0
  %v443 = vadd.f32 %v119, %v442
  %v444 = vpop.f32.mrb[0].mxu0
  %445 = vmatprep.mubr.f32.mxu0 0.0
  %446 = vmatmul.mubr.f32.gmra.mrb[0].mxu0 %v141
  %v447 = vpop.f32.mrb[0].mxu0
  %v448 = vadd.f32 %v119, %v447
  %v449 = vpop.f32.mrb[0].mxu0
  %450 = vmatprep.mubr.f32.mxu0 0.0
  %451 = vmatmul.mubr.f32.gmra.mrb[0].mxu0 %v144
  %v452 = vpop.f32.mrb[0].mxu0
  %v453 = vadd.f32 %v119, %v452
  %v454 = vpop.f32.mrb[0].mxu0
  %455 = vmatprep.mubr.f32.mxu0 0.0
  %456 = vmatmul.mubr.f32.gmra.mrb[0].mxu0 %v147
  %v457 = vpop.f32.mrb[0].mxu0
  %v458 = vadd.f32 %v119, %v457
  %v459 = vpop.f32.mrb[0].mxu0
  %460 = vmatprep.mubr.f32.mxu0 0.0
  %461 = vmatmul.mubr.f32.gmra.mrb[0].mxu0 %v150
  %v462 = vpop.f32.mrb[0].mxu0
  %v463 = vadd.f32 %v119, %v462
  %v464 = vpop.f32.mrb[0].mxu0
  %465 = vmatprep.mubr.f32.mxu0 0.0
  %466 = vmatmul.mubr.f32.gmra.mrb[0].mxu0 %v153
  %v467 = vpop.f32.mrb[0].mxu0
  %v468 = vadd.f32 %v119, %v467
  %v469 = vpop.f32.mrb[0].mxu0
  %470 = vmatprep.mubr.f32.mxu0 0.0
  %471 = vmatmul.mubr.f32.gmra.mrb[0].mxu0 %v156
  %v472 = vpop.f32.mrb[0].mxu0
  %v473 = vadd.f32 %v119, %v472
  %v474 = vpop.f32.mrb[0].mxu0
  %475 = vmatprep.mubr.f32.mxu0 0.0
  %476 = vmatmul.mubr.f32.gmra.mrb[0].mxu0 %v159
  %v477 = vpop.f32.mrb[0].mxu0
  %v478 = vadd.f32 %v119, %v477
  %v479 = vpop.f32.mrb[0].mxu0
  %480 = vmatprep.mubr.f32.mxu0 0.0
  %481 = vmatmul.mubr.f32.gmra.mrb[0].mxu0 %v162
  %v482 = vpop.f32.mrb[0].mxu0
  %v483 = vadd.f32 %v119, %v482
  %v484 = vpop.f32.mrb[0].mxu0
  %485 = vmatprep.mubr.f32.mxu0 0.0
  %486 = vmatmul.mubr.f32.gmra.mrb[0].mxu0 %v165
  %v487 = vpop.f32.mrb[0].mxu0
  %v488 = vadd.f32 %v119, %v487
  %v489 = vpop.f32.mrb[0].mxu0
  %490 = vmatprep.mubr.f32.mxu0 0.0
  %491 = vmatmul.mubr.f32.gmra.mrb[0].mxu0 %v168
  %v492 = vpop.f32.mrb[0].mxu0
  %v493 = vadd.f32 %v119, %v492
  %v494 = vpop.f32.mrb[0].mxu0
  %495 = vmatprep.mubr.f32.mxu0 0.0
  %496 = vmatmul.mubr.f32.gmra.mrb[0].mxu0 %v171
  %v497 = vpop.f32.mrb[0].mxu0
  %v498 = vadd.f32 %v119, %v497
  %v499 = vpop.f32.mrb[0].mxu0
  %500 = vmatprep.mubr.f32.mxu0 0.0
  %501 = vmatmul.mubr.f32.gmra.mrb[0].mxu0 %v174
  %v502 = vpop.f32.mrb[0].mxu0
  %v503 = vadd.f32 %v119, %v502
  %v504 = vpop.f32.mrb[0].mxu0
  %505 = vmatprep.mubr.f32.mxu0 0.0
  %506 = vmatmul.mubr.f32.gmra.mrb[0].mxu0 %v177
  %v507 = vpop.f32.mrb[0].mxu0
  %v508 = vadd.f32 %v119, %v507
  %v509 = vpop.f32.mrb[0].mxu0
  %510 = vmatprep.mubr.f32.mxu0 0.0
  %511 = vmatmul.mubr.f32.gmra.mrb[0].mxu0 %v180
  %v512 = vpop.f32.mrb[0].mxu0
  %v513 = vadd.f32 %v119, %v512
  %v514 = vpop.f32.mrb[0].mxu0
  %515 = vmatprep.mubr.f32.mxu0 0.0
  %516 = vmatmul.mubr.f32.gmra.mrb[0].mxu0 %v183
  %v517 = vpop.f32.mrb[0].mxu0
  %v518 = vadd.f32 %v119, %v517
  %v519 = vpop.f32.mrb[0].mxu0
  %520 = vmatprep.mubr.f32.mxu0 0.0
  %521 = vmatmul.mubr.f32.gmra.mrb[0].mxu0 %v186
  %v522 = vpop.f32.mrb[0].mxu0
  %v523 = vadd.f32 %v119, %v522
  %v524 = vpop.f32.mrb[0].mxu0
  %525 = vmatprep.mubr.f32.mxu0 0.0
  %526 = vmatmul.mubr.f32.gmra.mrb[0].mxu0 %v189
  %v527 = vpop.f32.mrb[0].mxu0
  %v528 = vadd.f32 %v119, %v527
  %v529 = vpop.f32.mrb[0].mxu0
  %530 = vmatprep.mubr.f32.mxu0 0.0
  %531 = vmatmul.mubr.f32.gmra.mrb[0].mxu0 %v192
  %v532 = vpop.f32.mrb[0].mxu0
  %v533 = vadd.f32 %v119, %v532
  %v534 = vpop.f32.mrb[0].mxu0
  %535 = vmatprep.mubr.f32.mxu0 0.0
  %536 = vmatmul.mubr.f32.gmra.mrb[0].mxu0 %v195
  %v537 = vpop.f32.mrb[0].mxu0
  %v538 = vadd.f32 %v119, %v537
  %v539 = vpop.f32.mrb[0].mxu0
  %540 = vmatprep.mubr.f32.mxu0 0.0
  %541 = vmatmul.mubr.f32.gmra.mrb[0].mxu0 %v198
  %v542 = vpop.f32.mrb[0].mxu0
  %v543 = vadd.f32 %v119, %v542
  %v544 = vpop.f32.mrb[0].mxu0
  %545 = vmatprep.mubr.f32.mxu0 0.0
  %546 = vmatmul.mubr.f32.gmra.mrb[0].mxu0 %v201
  %v547 = vpop.f32.mrb[0].mxu0
  %v548 = vadd.f32 %v119, %v547
  %v549 = vpop.f32.mrb[0].mxu0
  %550 = vmatprep.mubr.f32.mxu0 0.0
  %551 = vmatmul.mubr.f32.gmra.mrb[0].mxu0 %v204
  %v552 = vpop.f32.mrb[0].mxu0
  %v553 = vadd.f32 %v119, %v552
  %v554 = vpop.f32.mrb[0].mxu0
  %555 = vmatprep.mubr.f32.mxu0 0.0
  %556 = vmatmul.mubr.f32.gmra.mrb[0].mxu0 %v207
  %v557 = vpop.f32.mrb[0].mxu0
  %v558 = vadd.f32 %v119, %v557
  %v559 = vpop.f32.mrb[0].mxu0
  %560 = vmatprep.mubr.f32.mxu0 0.0
  %561 = vmatmul.mubr.f32.gmra.mrb[0].mxu0 %v210
  %v562 = vpop.f32.mrb[0].mxu0
  %v563 = vadd.f32 %v119, %v562
  %v564 = vpop.f32.mrb[0].mxu0
  %565 = vmatprep.mubr.f32.mxu0 0.0
  %566 = vmatmul.mubr.f32.gmra.mrb[0].mxu0 %v213
  %v567 = vpop.f32.mrb[0].mxu0
  %v568 = vadd.f32 %v119, %v567
  %v569 = vpop.f32.mrb[0].mxu0
  %570 = vmatprep.mubr.f32.mxu0 0.0
  %571 = vmatmul.mubr.f32.gmra.mrb[0].mxu0 %v216
  %v572 = vpop.f32.mrb[0].mxu0
  %v573 = vadd.f32 %v119, %v572
  %v574 = vpop.f32.mrb[0].mxu0
  %575 = vmatprep.mubr.f32.mxu0 0.0
  %576 = vmatmul.mubr.f32.gmra.mrb[0].mxu0 %v219
  %v577 = vpop.f32.mrb[0].mxu0
  %v578 = vadd.f32 %v119, %v577
  %v579 = vpop.f32.mrb[0].mxu0
  %580 = vmatprep.mubr.f32.mxu0 0.0
  %581 = vmatmul.mubr.f32.gmra.mrb[0].mxu0 %v222
  %v582 = vpop.f32.mrb[0].mxu0
  %v583 = vadd.f32 %v119, %v582
  %v584 = vpop.f32.mrb[0].mxu0
  %585 = vmatprep.mubr.f32.mxu0 0.0
  %586 = vmatmul.mubr.f32.gmra.mrb[0].mxu0 %v225
  %v587 = vpop.f32.mrb[0].mxu0
  %v588 = vadd.f32 %v119, %v587
  %v589 = vpop.f32.mrb[0].mxu0
  %590 = vmatprep.mubr.f32.mxu0 0.0
  %591 = vmatmul.mubr.f32.gmra.mrb[0].mxu0 %v228
  %v592 = vpop.f32.mrb[0].mxu0
  %v593 = vadd.f32 %v119, %v592
  %v594 = vpop.f32.mrb[0].mxu0
  %595 = vmatprep.mubr.f32.mxu0 0.0
  %596 = vmatmul.mubr.f32.gmra.mrb[0].mxu0 %v231
  %v597 = vpop.f32.mrb[0].mxu0
  %v598 = vadd.f32 %v119, %v597
  %v599 = vpop.f32.mrb[0].mxu0
  %600 = vmatprep.mubr.f32.mxu0 0.0
  %601 = vmatmul.mubr.f32.gmra.mrb[0].mxu0 %v234
  %v602 = vpop.f32.mrb[0].mxu0
  %v603 = vadd.f32 %v119, %v602
  %v604 = vpop.f32.mrb[0].mxu0
  %605 = vmatprep.mubr.f32.mxu0 0.0
  %606 = vmatmul.mubr.f32.gmra.mrb[0].mxu0 %v237
  %v607 = vpop.f32.mrb[0].mxu0
  %v608 = vadd.f32 %v119, %v607
  %v609 = vpop.f32.mrb[0].mxu0
  %610 = vmatprep.mubr.f32.mxu0 0.0
  %611 = vmatmul.mubr.f32.gmra.mrb[0].mxu0 %v240
  %v612 = vpop.f32.mrb[0].mxu0
  %v613 = vadd.f32 %v119, %v612
  %v614 = vpop.f32.mrb[0].mxu0
  %615 = vmatprep.mubr.f32.mxu0 0.0
  %616 = vmatmul.mubr.f32.gmra.mrb[0].mxu0 %v243
  %v617 = vpop.f32.mrb[0].mxu0
  %v618 = vadd.f32 %v119, %v617
  %v619 = vpop.f32.mrb[0].mxu0
  %620 = vmatprep.mubr.f32.mxu0 0.0
  %621 = vmatmul.mubr.f32.gmra.mrb[0].mxu0 %v246
  %v622 = vpop.f32.mrb[0].mxu0
  %v623 = vadd.f32 %v119, %v622
  %v624 = vpop.f32.mrb[0].mxu0
  %625 = vmatprep.mubr.f32.mxu0 0.0
  %626 = vmatmul.mubr.f32.gmra.mrb[0].mxu0 %v249
  %v627 = vpop.f32.mrb[0].mxu0
  %v628 = vadd.f32 %v119, %v627
  %v629 = vpop.f32.mrb[0].mxu0
  %630 = vmatprep.mubr.f32.mxu0 0.0
  %631 = vmatmul.mubr.f32.gmra.mrb[0].mxu0 %v252
  %v632 = vpop.f32.mrb[0].mxu0
  %v633 = vadd.f32 %v119, %v632
  %v634 = vpop.f32.mrb[0].mxu0
  %635 = vmatprep.mubr.f32.mxu0 0.0
  %636 = vmatmul.mubr.f32.gmra.mrb[0].mxu0 %v255
  %v637 = vpop.f32.mrb[0].mxu0
  %v638 = vadd.f32 %v119, %v637
  %v639 = vpop.f32.mrb[0].mxu0
  %640 = vmatprep.mubr.f32.mxu0 0.0
  %641 = vmatmul.mubr.f32.gmra.mrb[0].mxu0 %v258
  %v642 = vpop.f32.mrb[0].mxu0
  %v643 = vadd.f32 %v119, %v642
  %v644 = vpop.f32.mrb[0].mxu0
  %645 = vmatprep.mubr.f32.mxu0 0.0
  %646 = vmatmul.mubr.f32.gmra.mrb[0].mxu0 %v261
  %v647 = vpop.f32.mrb[0].mxu0
  %v648 = vadd.f32 %v119, %v647
  %v649 = vpop.f32.mrb[0].mxu0
  %650 = vmatprep.mubr.f32.mxu0 0.0
  %651 = vmatmul.mubr.f32.gmra.mrb[0].mxu0 %v264
  %v652 = vpop.f32.mrb[0].mxu0
  %v653 = vadd.f32 %v119, %v652
  %v654 = vpop.f32.mrb[0].mxu0
  %655 = vmatprep.mubr.f32.mxu0 0.0
  %656 = vmatmul.mubr.f32.gmra.mrb[0].mxu0 %v267
  %v657 = vpop.f32.mrb[0].mxu0
  %v658 = vadd.f32 %v119, %v657
  %v659 = vpop.f32.mrb[0].mxu0
  %660 = vmatprep.mubr.f32.mxu0 0.0
  %661 = vmatmul.mubr.f32.gmra.mrb[0].mxu0 %v270
  %v662 = vpop.f32.mrb[0].mxu0
  %v663 = vadd.f32 %v119, %v662
  %v664 = vpop.f32.mrb[0].mxu0
  %665 = vmatprep.mubr.f32.mxu0 0.0
  %666 = vmatmul.mubr.f32.gmra.mrb[0].mxu0 %v273
  %v667 = vpop.f32.mrb[0].mxu0
  %v668 = vadd.f32 %v119, %v667
  %v669 = vpop.f32.mrb[0].mxu0
  %670 = vmatprep.mubr.f32.mxu0 0.0
  %671 = vmatmul.mubr.f32.gmra.mrb[0].mxu0 %v276
  %v672 = vpop.f32.mrb[0].mxu0
  %v673 = vadd.f32 %v119, %v672
  %v674 = vpop.f32.mrb[0].mxu0
  %675 = vmatprep.mubr.f32.mxu0 0.0
  %676 = vmatmul.mubr.f32.gmra.mrb[0].mxu0 %v279
  %v677 = vpop.f32.mrb[0].mxu0
  %v678 = vadd.f32 %v119, %v677
  %v679 = vpop.f32.mrb[0].mxu0
  %680 = vmatprep.mubr.f32.mxu0 0.0
  %681 = vmatmul.mubr.f32.gmra.mrb[0].mxu0 %v282
  %v682 = vpop.f32.mrb[0].mxu0
  %v683 = vadd.f32 %v119, %v682
  %v684 = vpop.f32.mrb[0].mxu0
  %685 = vmatprep.mubr.f32.mxu0 0.0
  %686 = vmatmul.mubr.f32.gmra.mrb[0].mxu0 %v285
  %v687 = vpop.f32.mrb[0].mxu0
  %v688 = vadd.f32 %v119, %v687
  %v689 = vpop.f32.mrb[0].mxu0
  %690 = vmatprep.mubr.f32.mxu0 0.0
  %691 = vmatmul.mubr.f32.gmra.mrb[0].mxu0 %v288
  %v692 = vpop.f32.mrb[0].mxu0
  %v693 = vadd.f32 %v119, %v692
  %v694 = vpop.f32.mrb[0].mxu0
  %695 = vmatprep.mubr.f32.mxu0 0.0
  %696 = vmatmul.mubr.f32.gmra.mrb[0].mxu0 %v291
  %v697 = vpop.f32.mrb[0].mxu0
  %v698 = vadd.f32 %v119, %v697
  %v699 = vpop.f32.mrb[0].mxu0
  %700 = vmatprep.mubr.f32.mxu0 0.0
  %701 = vmatmul.mubr.f32.gmra.mrb[0].mxu0 %v294
  %v702 = vpop.f32.mrb[0].mxu0
  %v703 = vadd.f32 %v119, %v702
  %v704 = vpop.f32.mrb[0].mxu0
  %705 = vmatprep.mubr.f32.mxu0 0.0
  %706 = vmatmul.mubr.f32.gmra.mrb[0].mxu0 %v297
  %v707 = vpop.f32.mrb[0].mxu0
  %v708 = vadd.f32 %v119, %v707
  %v709 = vpop.f32.mrb[0].mxu0
  %710 = vmatprep.mubr.f32.mxu0 0.0
  %711 = vmatmul.mubr.f32.gmra.mrb[0].mxu0 %v300
  %v712 = vpop.f32.mrb[0].mxu0
  %v713 = vadd.f32 %v119, %v712
  %v714 = vpop.f32.mrb[0].mxu0
  %715 = vmatprep.mubr.f32.mxu0 0.0
  %716 = vmatmul.mubr.f32.gmra.mrb[0].mxu0 %v303
  %v717 = vpop.f32.mrb[0].mxu0
  %v718 = vadd.f32 %v119, %v717
  %v719 = vpop.f32.mrb[0].mxu0
  %720 = vmatprep.mubr.f32.mxu0 0.0
  %721 = vmatmul.mubr.f32.gmra.mrb[0].mxu0 %v306
  %v722 = vpop.f32.mrb[0].mxu0
  %v723 = vadd.f32 %v119, %v722
  %v724 = vpop.f32.mrb[0].mxu0
  %725 = vmatprep.mubr.f32.mxu0 0.0
  %726 = vmatmul.mubr.f32.gmra.mrb[0].mxu0 %v309
  %v727 = vpop.f32.mrb[0].mxu0
  %v728 = vadd.f32 %v119, %v727
  %v729 = vpop.f32.mrb[0].mxu0
  %730 = vmatprep.mubr.f32.mxu0 0.0
  %731 = vmatmul.mubr.f32.gmra.mrb[0].mxu0 %v312
  %v732 = vpop.f32.mrb[0].mxu0
  %v733 = vadd.f32 %v119, %v732
  %v734 = vpop.f32.mrb[0].mxu0
  %735 = vmatprep.mubr.f32.mxu0 0.0
  %736 = vmatmul.mubr.f32.gmra.mrb[0].mxu0 %v315
  %v737 = vpop.f32.mrb[0].mxu0
  %v738 = vadd.f32 %v119, %v737
  %v739 = vpop.f32.mrb[0].mxu0
  %740 = vmatprep.mubr.f32.mxu0 0.0
  %741 = vmatmul.mubr.f32.gmra.mrb[0].mxu0 %v318
  %v742 = vpop.f32.mrb[0].mxu0
  %v743 = vadd.f32 %v119, %v742
  %v744 = vpop.f32.mrb[0].mxu0
  %745 = vmatprep.mubr.f32.mxu0 0.0
  %746 = vmatmul.mubr.f32.gmra.mrb[0].mxu0 %v321
  %v747 = vpop.f32.mrb[0].mxu0
  %v748 = vadd.f32 %v119, %v747
  %v749 = vpop.f32.mrb[0].mxu0
  %750 = vmatprep.mubr.f32.mxu0 0.0
  %751 = vmatmul.mubr.f32.gmra.mrb[0].mxu0 %v324
  %v752 = vpop.f32.mrb[0].mxu0
  %v753 = vadd.f32 %v119, %v752
  %v754 = vpop.f32.mrb[0].mxu0
  %755 = vmatprep.mubr.f32.mxu0 0.0
  %756 = vmatmul.mubr.f32.gmra.mrb[0].mxu0 %v327
  %v757 = vpop.f32.mrb[0].mxu0
  %v758 = vadd.f32 %v119, %v757
  %v759 = vpop.f32.mrb[0].mxu0
  %760 = vmatprep.mubr.f32.mxu0 0.0
  %761 = vmatmul.mubr.f32.gmra.mrb[0].mxu0 %v330
  %v762 = vpop.f32.mrb[0].mxu0
  %v763 = vadd.f32 %v119, %v762
  %v764 = vpop.f32.mrb[0].mxu0
  %765 = vmatprep.mubr.f32.mxu0 0.0
  %766 = vmatmul.mubr.f32.gmra.mrb[0].mxu0 %v333
  %v767 = vpop.f32.mrb[0].mxu0
  %v768 = vadd.f32 %v119, %v767
  %v769 = vpop.f32.mrb[0].mxu0
  %770 = vmatprep.mubr.f32.mxu0 0.0
  %771 = vmatmul.mubr.f32.gmra.mrb[0].mxu0 %v336
  %v772 = vpop.f32.mrb[0].mxu0
  %v773 = vadd.f32 %v119, %v772
  %v774 = vpop.f32.mrb[0].mxu0
  %775 = vmatprep.mubr.f32.mxu0 0.0
  %776 = vmatmul.mubr.f32.gmra.mrb[0].mxu0 %v339
  %v777 = vpop.f32.mrb[0].mxu0
  %v778 = vadd.f32 %v119, %v777
  %v779 = vpop.f32.mrb[0].mxu0
  %780 = vmatprep.mubr.f32.mxu0 0.0
  %781 = vmatmul.mubr.f32.gmra.mrb[0].mxu0 %v342
  %v782 = vpop.f32.mrb[0].mxu0
  %v783 = vadd.f32 %v119, %v782
  %v784 = vpop.f32.mrb[0].mxu0
  %785 = vmatprep.mubr.f32.mxu0 0.0
  %786 = vmatmul.mubr.f32.gmra.mrb[0].mxu0 %v345
  %v787 = vpop.f32.mrb[0].mxu0
  %v788 = vadd.f32 %v119, %v787
  %v789 = vpop.f32.mrb[0].mxu0
  %790 = vdwg.mxu0
  %v791 = vmax.f32 %v418, 0.0
  %v792 = vmax.f32 %v423, 0.0
  %v793 = vmax.f32 %v428, 0.0
  %v794 = vmax.f32 %v433, 0.0
  %v795 = vmax.f32 %v438, 0.0
  %v796 = vmax.f32 %v443, 0.0
  %v797 = vmax.f32 %v448, 0.0
  %v798 = vmax.f32 %v453, 0.0
  %v799 = vmax.f32 %v458, 0.0
  %v800 = vmax.f32 %v463, 0.0
  %v801 = vmax.f32 %v468, 0.0
  %v802 = vmax.f32 %v473, 0.0
  %v803 = vmax.f32 %v478, 0.0
  %v804 = vmax.f32 %v483, 0.0
  %v805 = vmax.f32 %v488, 0.0
  %v806 = vmax.f32 %v493, 0.0
  %v807 = vmax.f32 %v498, 0.0
  %v808 = vmax.f32 %v503, 0.0
  %v809 = vmax.f32 %v508, 0.0
  %v810 = vmax.f32 %v513, 0.0
  %v811 = vmax.f32 %v518, 0.0
  %v812 = vmax.f32 %v523, 0.0
  %v813 = vmax.f32 %v528, 0.0
  %v814 = vmax.f32 %v533, 0.0
  %v815 = vmax.f32 %v538, 0.0
  %v816 = vmax.f32 %v543, 0.0
  %v817 = vmax.f32 %v548, 0.0
  %v818 = vmax.f32 %v553, 0.0
  %v819 = vmax.f32 %v558, 0.0
  %v820 = vmax.f32 %v563, 0.0
  %v821 = vmax.f32 %v568, 0.0
  %v822 = vmax.f32 %v573, 0.0
  %v823 = vmax.f32 %v578, 0.0
  %v824 = vmax.f32 %v583, 0.0
  %v825 = vmax.f32 %v588, 0.0
  %v826 = vmax.f32 %v593, 0.0
  %v827 = vmax.f32 %v598, 0.0
  %v828 = vmax.f32 %v603, 0.0
  %v829 = vmax.f32 %v608, 0.0
  %v830 = vmax.f32 %v613, 0.0
  %v831 = vmax.f32 %v618, 0.0
  %v832 = vmax.f32 %v623, 0.0
  %v833 = vmax.f32 %v628, 0.0
  %v834 = vmax.f32 %v633, 0.0
  %v835 = vmax.f32 %v638, 0.0
  %v836 = vmax.f32 %v643, 0.0
  %v837 = vmax.f32 %v648, 0.0
  %v838 = vmax.f32 %v653, 0.0
  %v839 = vmax.f32 %v658, 0.0
  %v840 = vmax.f32 %v663, 0.0
  %v841 = vmax.f32 %v668, 0.0
  %v842 = vmax.f32 %v673, 0.0
  %v843 = vmax.f32 %v678, 0.0
  %v844 = vmax.f32 %v683, 0.0
  %v845 = vmax.f32 %v688, 0.0
  %v846 = vmax.f32 %v693, 0.0
  %v847 = vmax.f32 %v698, 0.0
  %v848 = vmax.f32 %v703, 0.0
  %v849 = vmax.f32 %v708, 0.0
  %v850 = vmax.f32 %v713, 0.0
  %v851 = vmax.f32 %v718, 0.0
  %v852 = vmax.f32 %v723, 0.0
  %v853 = vmax.f32 %v728, 0.0
  %v854 = vmax.f32 %v733, 0.0
  %v855 = vmax.f32 %v738, 0.0
  %v856 = vmax.f32 %v743, 0.0
  %v857 = vmax.f32 %v748, 0.0
  %v858 = vmax.f32 %v753, 0.0
  %v859 = vmax.f32 %v758, 0.0
  %v860 = vmax.f32 %v763, 0.0
  %v861 = vmax.f32 %v768, 0.0
  %v862 = vmax.f32 %v773, 0.0
  %v863 = vmax.f32 %v778, 0.0
  %v864 = vmax.f32 %v783, 0.0
  %v865 = vmax.f32 %v788, 0.0
  %v866 = vld [vmem:[%s3] sm:$0xff]
  %v867 = vld [vmem:[%s3 + $0x8] sm:$0xff]
  %v868 = vld [vmem:[%s3 + $0x10] sm:$0xff]
  %v869 = vld [vmem:[%s3 + $0x18] sm:$0xff]
  %v870 = vld [vmem:[%s3 + $0x20] sm:$0xff]
  %v871 = vld [vmem:[%s3 + $0x28] sm:$0xff]
  %v872 = vld [vmem:[%s3 + $0x30] sm:$0xff]
  %v873 = vld [vmem:[%s3 + $0x38] sm:$0xff]
  %v874 = vld [vmem:[%s3 + $0x40] sm:$0xff]
  %v875 = vld [vmem:[%s3 + $0x48] sm:$0xff]
  %v876 = vld [vmem:[%s3 + $0x50] sm:$0xff]
  %v877 = vld [vmem:[%s3 + $0x58] sm:$0xff]
  %v878 = vld [vmem:[%s3 + $0x60] sm:$0xff]
  %v879 = vld [vmem:[%s3 + $0x68] sm:$0xff]
  %v880 = vld [vmem:[%s3 + $0x70] sm:$0xff]
  %v881 = vld [vmem:[%s3 + $0x78] sm:$0xff]
  %v882 = vld [vmem:[%s4] sm:$0x1]
  %v884 = vlaneseq
  %v885 = vshrl.u32 %v884, 7
  %v886 = vsub.s32 0, %v885
  %v887 = vrot.slane %v882, %v886
  %889 = vmatprep.subr.mxu0 0.0
  %890 = vmatpush1.msra.mxu0 %v866
  %891 = vmatprep.subr.mxu0 0.0
  %892 = vmatpush1.msra.mxu0 %v867
  %893 = vmatprep.subr.mxu0 0.0
  %894 = vmatpush1.msra.mxu0 %v868
  %895 = vmatprep.subr.mxu0 0.0
  %896 = vmatpush1.msra.mxu0 %v869
  %897 = vmatprep.subr.mxu0 0.0
  %898 = vmatpush1.msra.mxu0 %v870
  %899 = vmatprep.subr.mxu0 0.0
  %900 = vmatpush1.msra.mxu0 %v871
  %901 = vmatprep.subr.mxu0 0.0
  %902 = vmatpush1.msra.mxu0 %v872
  %903 = vmatprep.subr.mxu0 0.0
  %904 = vmatpush1.msra.mxu0 %v873
  %905 = vmatprep.subr.mxu0 0.0
  %906 = vmatpush1.msra.mxu0 %v874
  %907 = vmatprep.subr.mxu0 0.0
  %908 = vmatpush1.msra.mxu0 %v875
  %909 = vmatprep.subr.mxu0 0.0
  %910 = vmatpush1.msra.mxu0 %v876
  %911 = vmatprep.subr.mxu0 0.0
  %912 = vmatpush1.msra.mxu0 %v877
  %913 = vmatprep.subr.mxu0 0.0
  %914 = vmatpush1.msra.mxu0 %v878
  %915 = vmatprep.subr.mxu0 0.0
  %916 = vmatpush1.msra.mxu0 %v879
  %917 = vmatprep.subr.mxu0 0.0
  %918 = vmatpush1.msra.mxu0 %v880
  %919 = vmatprep.subr.mxu0 0.0
  %920 = vmatpush1.msra.mxu0 %v881
  %921 = vmatprep.subr.mxu0 0.0
  %922 = vmatpush1.msra.mxu0 0.0
  %923 = vmatprep.subr.mxu0 0.0
  %924 = vmatpush1.msra.mxu0 0.0
  %925 = vmatprep.subr.mxu0 0.0
  %926 = vmatpush1.msra.mxu0 0.0
  %927 = vmatprep.subr.mxu0 0.0
  %928 = vmatpush1.msra.mxu0 0.0
  %929 = vmatprep.subr.mxu0 0.0
  %930 = vmatpush1.msra.mxu0 0.0
  %931 = vmatprep.subr.mxu0 0.0
  %932 = vmatpush1.msra.mxu0 0.0
  %933 = vmatprep.subr.mxu0 0.0
  %934 = vmatpush1.msra.mxu0 0.0
  %935 = vmatprep.subr.mxu0 0.0
  %936 = vmatpush1.msra.mxu0 0.0
  %937 = vmatprep.subr.mxu0 0.0
  %938 = vmatpush1.msra.mxu0 0.0
  %939 = vmatprep.subr.mxu0 0.0
  %940 = vmatpush1.msra.mxu0 0.0
  %941 = vmatprep.subr.mxu0 0.0
  %942 = vmatpush1.msra.mxu0 0.0
  %943 = vmatprep.subr.mxu0 0.0
  %944 = vmatpush1.msra.mxu0 0.0
  %945 = vmatprep.subr.mxu0 0.0
  %946 = vmatpush1.msra.mxu0 0.0
  %947 = vmatprep.subr.mxu0 0.0
  %948 = vmatpush1.msra.mxu0 0.0
  %949 = vmatprep.subr.mxu0 0.0
  %950 = vmatpush1.msra.mxu0 0.0
  %951 = vmatprep.subr.mxu0 0.0
  %952 = vmatpush1.msra.mxu0 0.0
  %953 = vmatprep.mubr.f32.mxu0 0.0
  %954 = vmatmul.mubr.f32.gmra.mrb[0].mxu0 %v791
  %v955 = vpop.f32.mrb[0].mxu0
  %v956 = vadd.f32 %v887, %v955
  %v957 = vpop.f32.mrb[0].mxu0
  %958 = vmatprep.mubr.f32.mxu0 0.0
  %959 = vmatmul.mubr.f32.gmra.mrb[0].mxu0 %v792
  %v960 = vpop.f32.mrb[0].mxu0
  %v961 = vadd.f32 %v887, %v960
  %v962 = vpop.f32.mrb[0].mxu0
  %963 = vmatprep.mubr.f32.mxu0 0.0
  %964 = vmatmul.mubr.f32.gmra.mrb[0].mxu0 %v793
  %v965 = vpop.f32.mrb[0].mxu0
  %v966 = vadd.f32 %v887, %v965
  %v967 = vpop.f32.mrb[0].mxu0
  %968 = vmatprep.mubr.f32.mxu0 0.0
  %969 = vmatmul.mubr.f32.gmra.mrb[0].mxu0 %v794
  %v970 = vpop.f32.mrb[0].mxu0
  %v971 = vadd.f32 %v887, %v970
  %v972 = vpop.f32.mrb[0].mxu0
  %973 = vmatprep.mubr.f32.mxu0 0.0
  %974 = vmatmul.mubr.f32.gmra.mrb[0].mxu0 %v795
  %v975 = vpop.f32.mrb[0].mxu0
  %v976 = vadd.f32 %v887, %v975
  %v977 = vpop.f32.mrb[0].mxu0
  %978 = vmatprep.mubr.f32.mxu0 0.0
  %979 = vmatmul.mubr.f32.gmra.mrb[0].mxu0 %v796
  %v980 = vpop.f32.mrb[0].mxu0
  %v981 = vadd.f32 %v887, %v980
  %v982 = vpop.f32.mrb[0].mxu0
  %983 = vmatprep.mubr.f32.mxu0 0.0
  %984 = vmatmul.mubr.f32.gmra.mrb[0].mxu0 %v797
  %v985 = vpop.f32.mrb[0].mxu0
  %v986 = vadd.f32 %v887, %v985
  %v987 = vpop.f32.mrb[0].mxu0
  %988 = vmatprep.mubr.f32.mxu0 0.0
  %989 = vmatmul.mubr.f32.gmra.mrb[0].mxu0 %v798
  %v990 = vpop.f32.mrb[0].mxu0
  %v991 = vadd.f32 %v887, %v990
  %v992 = vpop.f32.mrb[0].mxu0
  %993 = vmatprep.mubr.f32.mxu0 0.0
  %994 = vmatmul.mubr.f32.gmra.mrb[0].mxu0 %v799
  %v995 = vpop.f32.mrb[0].mxu0
  %v996 = vadd.f32 %v887, %v995
  %v997 = vpop.f32.mrb[0].mxu0
  %998 = vmatprep.mubr.f32.mxu0 0.0
  %999 = vmatmul.mubr.f32.gmra.mrb[0].mxu0 %v800
  %v1000 = vpop.f32.mrb[0].mxu0
  %v1001 = vadd.f32 %v887, %v1000
  %v1002 = vpop.f32.mrb[0].mxu0
  %1003 = vmatprep.mubr.f32.mxu0 0.0
  %1004 = vmatmul.mubr.f32.gmra.mrb[0].mxu0 %v801
  %v1005 = vpop.f32.mrb[0].mxu0
  %v1006 = vadd.f32 %v887, %v1005
  %v1007 = vpop.f32.mrb[0].mxu0
  %1008 = vmatprep.mubr.f32.mxu0 0.0
  %1009 = vmatmul.mubr.f32.gmra.mrb[0].mxu0 %v802
  %v1010 = vpop.f32.mrb[0].mxu0
  %v1011 = vadd.f32 %v887, %v1010
  %v1012 = vpop.f32.mrb[0].mxu0
  %1013 = vmatprep.mubr.f32.mxu0 0.0
  %1014 = vmatmul.mubr.f32.gmra.mrb[0].mxu0 %v803
  %v1015 = vpop.f32.mrb[0].mxu0
  %v1016 = vadd.f32 %v887, %v1015
  %v1017 = vpop.f32.mrb[0].mxu0
  %1018 = vmatprep.mubr.f32.mxu0 0.0
  %1019 = vmatmul.mubr.f32.gmra.mrb[0].mxu0 %v804
  %v1020 = vpop.f32.mrb[0].mxu0
  %v1021 = vadd.f32 %v887, %v1020
  %v1022 = vpop.f32.mrb[0].mxu0
  %1023 = vmatprep.mubr.f32.mxu0 0.0
  %1024 = vmatmul.mubr.f32.gmra.mrb[0].mxu0 %v805
  %v1025 = vpop.f32.mrb[0].mxu0
  %v1026 = vadd.f32 %v887, %v1025
  %v1027 = vpop.f32.mrb[0].mxu0
  %1028 = vmatprep.mubr.f32.mxu0 0.0
  %1029 = vmatmul.mubr.f32.gmra.mrb[0].mxu0 %v806
  %v1030 = vpop.f32.mrb[0].mxu0
  %v1031 = vadd.f32 %v887, %v1030
  %v1032 = vpop.f32.mrb[0].mxu0
  %1033 = vmatprep.mubr.f32.mxu0 0.0
  %1034 = vmatmul.mubr.f32.gmra.mrb[0].mxu0 %v807
  %v1035 = vpop.f32.mrb[0].mxu0
  %v1036 = vadd.f32 %v887, %v1035
  %v1037 = vpop.f32.mrb[0].mxu0
  %1038 = vmatprep.mubr.f32.mxu0 0.0
  %1039 = vmatmul.mubr.f32.gmra.mrb[0].mxu0 %v808
  %v1040 = vpop.f32.mrb[0].mxu0
  %v1041 = vadd.f32 %v887, %v1040
  %v1042 = vpop.f32.mrb[0].mxu0
  %1043 = vmatprep.mubr.f32.mxu0 0.0
  %1044 = vmatmul.mubr.f32.gmra.mrb[0].mxu0 %v809
  %v1045 = vpop.f32.mrb[0].mxu0
  %v1046 = vadd.f32 %v887, %v1045
  %v1047 = vpop.f32.mrb[0].mxu0
  %1048 = vmatprep.mubr.f32.mxu0 0.0
  %1049 = vmatmul.mubr.f32.gmra.mrb[0].mxu0 %v810
  %v1050 = vpop.f32.mrb[0].mxu0
  %v1051 = vadd.f32 %v887, %v1050
  %v1052 = vpop.f32.mrb[0].mxu0
  %1053 = vmatprep.mubr.f32.mxu0 0.0
  %1054 = vmatmul.mubr.f32.gmra.mrb[0].mxu0 %v811
  %v1055 = vpop.f32.mrb[0].mxu0
  %v1056 = vadd.f32 %v887, %v1055
  %v1057 = vpop.f32.mrb[0].mxu0
  %1058 = vmatprep.mubr.f32.mxu0 0.0
  %1059 = vmatmul.mubr.f32.gmra.mrb[0].mxu0 %v812
  %v1060 = vpop.f32.mrb[0].mxu0
  %v1061 = vadd.f32 %v887, %v1060
  %v1062 = vpop.f32.mrb[0].mxu0
  %1063 = vmatprep.mubr.f32.mxu0 0.0
  %1064 = vmatmul.mubr.f32.gmra.mrb[0].mxu0 %v813
  %v1065 = vpop.f32.mrb[0].mxu0
  %v1066 = vadd.f32 %v887, %v1065
  %v1067 = vpop.f32.mrb[0].mxu0
  %1068 = vmatprep.mubr.f32.mxu0 0.0
  %1069 = vmatmul.mubr.f32.gmra.mrb[0].mxu0 %v814
  %v1070 = vpop.f32.mrb[0].mxu0
  %v1071 = vadd.f32 %v887, %v1070
  %v1072 = vpop.f32.mrb[0].mxu0
  %1073 = vmatprep.mubr.f32.mxu0 0.0
  %1074 = vmatmul.mubr.f32.gmra.mrb[0].mxu0 %v815
  %v1075 = vpop.f32.mrb[0].mxu0
  %v1076 = vadd.f32 %v887, %v1075
  %v1077 = vpop.f32.mrb[0].mxu0
  %1078 = vmatprep.mubr.f32.mxu0 0.0
  %1079 = vmatmul.mubr.f32.gmra.mrb[0].mxu0 %v816
  %v1080 = vpop.f32.mrb[0].mxu0
  %v1081 = vadd.f32 %v887, %v1080
  %v1082 = vpop.f32.mrb[0].mxu0
  %1083 = vmatprep.mubr.f32.mxu0 0.0
  %1084 = vmatmul.mubr.f32.gmra.mrb[0].mxu0 %v817
  %v1085 = vpop.f32.mrb[0].mxu0
  %v1086 = vadd.f32 %v887, %v1085
  %v1087 = vpop.f32.mrb[0].mxu0
  %1088 = vmatprep.mubr.f32.mxu0 0.0
  %1089 = vmatmul.mubr.f32.gmra.mrb[0].mxu0 %v818
  %v1090 = vpop.f32.mrb[0].mxu0
  %v1091 = vadd.f32 %v887, %v1090
  %v1092 = vpop.f32.mrb[0].mxu0
  %1093 = vmatprep.mubr.f32.mxu0 0.0
  %1094 = vmatmul.mubr.f32.gmra.mrb[0].mxu0 %v819
  %v1095 = vpop.f32.mrb[0].mxu0
  %v1096 = vadd.f32 %v887, %v1095
  %v1097 = vpop.f32.mrb[0].mxu0
  %1098 = vmatprep.mubr.f32.mxu0 0.0
  %1099 = vmatmul.mubr.f32.gmra.mrb[0].mxu0 %v820
  %v1100 = vpop.f32.mrb[0].mxu0
  %v1101 = vadd.f32 %v887, %v1100
  %v1102 = vpop.f32.mrb[0].mxu0
  %1103 = vmatprep.mubr.f32.mxu0 0.0
  %1104 = vmatmul.mubr.f32.gmra.mrb[0].mxu0 %v821
  %v1105 = vpop.f32.mrb[0].mxu0
  %v1106 = vadd.f32 %v887, %v1105
  %v1107 = vpop.f32.mrb[0].mxu0
  %1108 = vmatprep.mubr.f32.mxu0 0.0
  %1109 = vmatmul.mubr.f32.gmra.mrb[0].mxu0 %v822
  %v1110 = vpop.f32.mrb[0].mxu0
  %v1111 = vadd.f32 %v887, %v1110
  %v1112 = vpop.f32.mrb[0].mxu0
  %1113 = vmatprep.mubr.f32.mxu0 0.0
  %1114 = vmatmul.mubr.f32.gmra.mrb[0].mxu0 %v823
  %v1115 = vpop.f32.mrb[0].mxu0
  %v1116 = vadd.f32 %v887, %v1115
  %v1117 = vpop.f32.mrb[0].mxu0
  %1118 = vmatprep.mubr.f32.mxu0 0.0
  %1119 = vmatmul.mubr.f32.gmra.mrb[0].mxu0 %v824
  %v1120 = vpop.f32.mrb[0].mxu0
  %v1121 = vadd.f32 %v887, %v1120
  %v1122 = vpop.f32.mrb[0].mxu0
  %1123 = vmatprep.mubr.f32.mxu0 0.0
  %1124 = vmatmul.mubr.f32.gmra.mrb[0].mxu0 %v825
  %v1125 = vpop.f32.mrb[0].mxu0
  %v1126 = vadd.f32 %v887, %v1125
  %v1127 = vpop.f32.mrb[0].mxu0
  %1128 = vmatprep.mubr.f32.mxu0 0.0
  %1129 = vmatmul.mubr.f32.gmra.mrb[0].mxu0 %v826
  %v1130 = vpop.f32.mrb[0].mxu0
  %v1131 = vadd.f32 %v887, %v1130
  %v1132 = vpop.f32.mrb[0].mxu0
  %1133 = vmatprep.mubr.f32.mxu0 0.0
  %1134 = vmatmul.mubr.f32.gmra.mrb[0].mxu0 %v827
  %v1135 = vpop.f32.mrb[0].mxu0
  %v1136 = vadd.f32 %v887, %v1135
  %v1137 = vpop.f32.mrb[0].mxu0
  %1138 = vmatprep.mubr.f32.mxu0 0.0
  %1139 = vmatmul.mubr.f32.gmra.mrb[0].mxu0 %v828
  %v1140 = vpop.f32.mrb[0].mxu0
  %v1141 = vadd.f32 %v887, %v1140
  %v1142 = vpop.f32.mrb[0].mxu0
  %1143 = vmatprep.mubr.f32.mxu0 0.0
  %1144 = vmatmul.mubr.f32.gmra.mrb[0].mxu0 %v829
  %v1145 = vpop.f32.mrb[0].mxu0
  %v1146 = vadd.f32 %v887, %v1145
  %v1147 = vpop.f32.mrb[0].mxu0
  %1148 = vmatprep.mubr.f32.mxu0 0.0
  %1149 = vmatmul.mubr.f32.gmra.mrb[0].mxu0 %v830
  %v1150 = vpop.f32.mrb[0].mxu0
  %v1151 = vadd.f32 %v887, %v1150
  %v1152 = vpop.f32.mrb[0].mxu0
  %1153 = vmatprep.mubr.f32.mxu0 0.0
  %1154 = vmatmul.mubr.f32.gmra.mrb[0].mxu0 %v831
  %v1155 = vpop.f32.mrb[0].mxu0
  %v1156 = vadd.f32 %v887, %v1155
  %v1157 = vpop.f32.mrb[0].mxu0
  %1158 = vmatprep.mubr.f32.mxu0 0.0
  %1159 = vmatmul.mubr.f32.gmra.mrb[0].mxu0 %v832
  %v1160 = vpop.f32.mrb[0].mxu0
  %v1161 = vadd.f32 %v887, %v1160
  %v1162 = vpop.f32.mrb[0].mxu0
  %1163 = vmatprep.mubr.f32.mxu0 0.0
  %1164 = vmatmul.mubr.f32.gmra.mrb[0].mxu0 %v833
  %v1165 = vpop.f32.mrb[0].mxu0
  %v1166 = vadd.f32 %v887, %v1165
  %v1167 = vpop.f32.mrb[0].mxu0
  %1168 = vmatprep.mubr.f32.mxu0 0.0
  %1169 = vmatmul.mubr.f32.gmra.mrb[0].mxu0 %v834
  %v1170 = vpop.f32.mrb[0].mxu0
  %v1171 = vadd.f32 %v887, %v1170
  %v1172 = vpop.f32.mrb[0].mxu0
  %1173 = vmatprep.mubr.f32.mxu0 0.0
  %1174 = vmatmul.mubr.f32.gmra.mrb[0].mxu0 %v835
  %v1175 = vpop.f32.mrb[0].mxu0
  %v1176 = vadd.f32 %v887, %v1175
  %v1177 = vpop.f32.mrb[0].mxu0
  %1178 = vmatprep.mubr.f32.mxu0 0.0
  %1179 = vmatmul.mubr.f32.gmra.mrb[0].mxu0 %v836
  %v1180 = vpop.f32.mrb[0].mxu0
  %v1181 = vadd.f32 %v887, %v1180
  %v1182 = vpop.f32.mrb[0].mxu0
  %1183 = vmatprep.mubr.f32.mxu0 0.0
  %1184 = vmatmul.mubr.f32.gmra.mrb[0].mxu0 %v837
  %v1185 = vpop.f32.mrb[0].mxu0
  %v1186 = vadd.f32 %v887, %v1185
  %v1187 = vpop.f32.mrb[0].mxu0
  %1188 = vmatprep.mubr.f32.mxu0 0.0
  %1189 = vmatmul.mubr.f32.gmra.mrb[0].mxu0 %v838
  %v1190 = vpop.f32.mrb[0].mxu0
  %v1191 = vadd.f32 %v887, %v1190
  %v1192 = vpop.f32.mrb[0].mxu0
  %1193 = vmatprep.mubr.f32.mxu0 0.0
  %1194 = vmatmul.mubr.f32.gmra.mrb[0].mxu0 %v839
  %v1195 = vpop.f32.mrb[0].mxu0
  %v1196 = vadd.f32 %v887, %v1195
  %v1197 = vpop.f32.mrb[0].mxu0
  %1198 = vmatprep.mubr.f32.mxu0 0.0
  %1199 = vmatmul.mubr.f32.gmra.mrb[0].mxu0 %v840
  %v1200 = vpop.f32.mrb[0].mxu0
  %v1201 = vadd.f32 %v887, %v1200
  %v1202 = vpop.f32.mrb[0].mxu0
  %1203 = vmatprep.mubr.f32.mxu0 0.0
  %1204 = vmatmul.mubr.f32.gmra.mrb[0].mxu0 %v841
  %v1205 = vpop.f32.mrb[0].mxu0
  %v1206 = vadd.f32 %v887, %v1205
  %v1207 = vpop.f32.mrb[0].mxu0
  %1208 = vmatprep.mubr.f32.mxu0 0.0
  %1209 = vmatmul.mubr.f32.gmra.mrb[0].mxu0 %v842
  %v1210 = vpop.f32.mrb[0].mxu0
  %v1211 = vadd.f32 %v887, %v1210
  %v1212 = vpop.f32.mrb[0].mxu0
  %1213 = vmatprep.mubr.f32.mxu0 0.0
  %1214 = vmatmul.mubr.f32.gmra.mrb[0].mxu0 %v843
  %v1215 = vpop.f32.mrb[0].mxu0
  %v1216 = vadd.f32 %v887, %v1215
  %v1217 = vpop.f32.mrb[0].mxu0
  %1218 = vmatprep.mubr.f32.mxu0 0.0
  %1219 = vmatmul.mubr.f32.gmra.mrb[0].mxu0 %v844
  %v1220 = vpop.f32.mrb[0].mxu0
  %v1221 = vadd.f32 %v887, %v1220
  %v1222 = vpop.f32.mrb[0].mxu0
  %1223 = vmatprep.mubr.f32.mxu0 0.0
  %1224 = vmatmul.mubr.f32.gmra.mrb[0].mxu0 %v845
  %v1225 = vpop.f32.mrb[0].mxu0
  %v1226 = vadd.f32 %v887, %v1225
  %v1227 = vpop.f32.mrb[0].mxu0
  %1228 = vmatprep.mubr.f32.mxu0 0.0
  %1229 = vmatmul.mubr.f32.gmra.mrb[0].mxu0 %v846
  %v1230 = vpop.f32.mrb[0].mxu0
  %v1231 = vadd.f32 %v887, %v1230
  %v1232 = vpop.f32.mrb[0].mxu0
  %1233 = vmatprep.mubr.f32.mxu0 0.0
  %1234 = vmatmul.mubr.f32.gmra.mrb[0].mxu0 %v847
  %v1235 = vpop.f32.mrb[0].mxu0
  %v1236 = vadd.f32 %v887, %v1235
  %v1237 = vpop.f32.mrb[0].mxu0
  %1238 = vmatprep.mubr.f32.mxu0 0.0
  %1239 = vmatmul.mubr.f32.gmra.mrb[0].mxu0 %v848
  %v1240 = vpop.f32.mrb[0].mxu0
  %v1241 = vadd.f32 %v887, %v1240
  %v1242 = vpop.f32.mrb[0].mxu0
  %1243 = vmatprep.mubr.f32.mxu0 0.0
  %1244 = vmatmul.mubr.f32.gmra.mrb[0].mxu0 %v849
  %v1245 = vpop.f32.mrb[0].mxu0
  %v1246 = vadd.f32 %v887, %v1245
  %v1247 = vpop.f32.mrb[0].mxu0
  %1248 = vmatprep.mubr.f32.mxu0 0.0
  %1249 = vmatmul.mubr.f32.gmra.mrb[0].mxu0 %v850
  %v1250 = vpop.f32.mrb[0].mxu0
  %v1251 = vadd.f32 %v887, %v1250
  %v1252 = vpop.f32.mrb[0].mxu0
  %1253 = vmatprep.mubr.f32.mxu0 0.0
  %1254 = vmatmul.mubr.f32.gmra.mrb[0].mxu0 %v851
  %v1255 = vpop.f32.mrb[0].mxu0
  %v1256 = vadd.f32 %v887, %v1255
  %v1257 = vpop.f32.mrb[0].mxu0
  %1258 = vmatprep.mubr.f32.mxu0 0.0
  %1259 = vmatmul.mubr.f32.gmra.mrb[0].mxu0 %v852
  %v1260 = vpop.f32.mrb[0].mxu0
  %v1261 = vadd.f32 %v887, %v1260
  %v1262 = vpop.f32.mrb[0].mxu0
  %1263 = vmatprep.mubr.f32.mxu0 0.0
  %1264 = vmatmul.mubr.f32.gmra.mrb[0].mxu0 %v853
  %v1265 = vpop.f32.mrb[0].mxu0
  %v1266 = vadd.f32 %v887, %v1265
  %v1267 = vpop.f32.mrb[0].mxu0
  %1268 = vmatprep.mubr.f32.mxu0 0.0
  %1269 = vmatmul.mubr.f32.gmra.mrb[0].mxu0 %v854
  %v1270 = vpop.f32.mrb[0].mxu0
  %v1271 = vadd.f32 %v887, %v1270
  %v1272 = vpop.f32.mrb[0].mxu0
  %1273 = vmatprep.mubr.f32.mxu0 0.0
  %1274 = vmatmul.mubr.f32.gmra.mrb[0].mxu0 %v855
  %v1275 = vpop.f32.mrb[0].mxu0
  %v1276 = vadd.f32 %v887, %v1275
  %v1277 = vpop.f32.mrb[0].mxu0
  %1278 = vmatprep.mubr.f32.mxu0 0.0
  %1279 = vmatmul.mubr.f32.gmra.mrb[0].mxu0 %v856
  %v1280 = vpop.f32.mrb[0].mxu0
  %v1281 = vadd.f32 %v887, %v1280
  %v1282 = vpop.f32.mrb[0].mxu0
  %1283 = vmatprep.mubr.f32.mxu0 0.0
  %1284 = vmatmul.mubr.f32.gmra.mrb[0].mxu0 %v857
  %v1285 = vpop.f32.mrb[0].mxu0
  %v1286 = vadd.f32 %v887, %v1285
  %v1287 = vpop.f32.mrb[0].mxu0
  %1288 = vmatprep.mubr.f32.mxu0 0.0
  %1289 = vmatmul.mubr.f32.gmra.mrb[0].mxu0 %v858
  %v1290 = vpop.f32.mrb[0].mxu0
  %v1291 = vadd.f32 %v887, %v1290
  %v1292 = vpop.f32.mrb[0].mxu0
  %1293 = vmatprep.mubr.f32.mxu0 0.0
  %1294 = vmatmul.mubr.f32.gmra.mrb[0].mxu0 %v859
  %v1295 = vpop.f32.mrb[0].mxu0
  %v1296 = vadd.f32 %v887, %v1295
  %v1297 = vpop.f32.mrb[0].mxu0
  %1298 = vmatprep.mubr.f32.mxu0 0.0
  %1299 = vmatmul.mubr.f32.gmra.mrb[0].mxu0 %v860
  %v1300 = vpop.f32.mrb[0].mxu0
  %v1301 = vadd.f32 %v887, %v1300
  %v1302 = vpop.f32.mrb[0].mxu0
  %1303 = vmatprep.mubr.f32.mxu0 0.0
  %1304 = vmatmul.mubr.f32.gmra.mrb[0].mxu0 %v861
  %v1305 = vpop.f32.mrb[0].mxu0
  %v1306 = vadd.f32 %v887, %v1305
  %v1307 = vpop.f32.mrb[0].mxu0
  %1308 = vmatprep.mubr.f32.mxu0 0.0
  %1309 = vmatmul.mubr.f32.gmra.mrb[0].mxu0 %v862
  %v1310 = vpop.f32.mrb[0].mxu0
  %v1311 = vadd.f32 %v887, %v1310
  %v1312 = vpop.f32.mrb[0].mxu0
  %1313 = vmatprep.mubr.f32.mxu0 0.0
  %1314 = vmatmul.mubr.f32.gmra.mrb[0].mxu0 %v863
  %v1315 = vpop.f32.mrb[0].mxu0
  %v1316 = vadd.f32 %v887, %v1315
  %v1317 = vpop.f32.mrb[0].mxu0
  %1318 = vmatprep.mubr.f32.mxu0 0.0
  %1319 = vmatmul.mubr.f32.gmra.mrb[0].mxu0 %v864
  %v1320 = vpop.f32.mrb[0].mxu0
  %v1321 = vadd.f32 %v887, %v1320
  %v1322 = vpop.f32.mrb[0].mxu0
  %1323 = vmatprep.mubr.f32.mxu0 0.0
  %1324 = vmatmul.mubr.f32.gmra.mrb[0].mxu0 %v865
  %v1325 = vpop.f32.mrb[0].mxu0
  %v1326 = vadd.f32 %v887, %v1325
  %v1327 = vpop.f32.mrb[0].mxu0
  %1328 = vdwg.mxu0
  %v1329 = vmax.f32 %v956, 0.0
  %v1330 = vmax.f32 %v961, 0.0
  %v1331 = vmax.f32 %v966, 0.0
  %v1332 = vmax.f32 %v971, 0.0
  %v1333 = vmax.f32 %v976, 0.0
  %v1334 = vmax.f32 %v981, 0.0
  %v1335 = vmax.f32 %v986, 0.0
  %v1336 = vmax.f32 %v991, 0.0
  %v1337 = vmax.f32 %v996, 0.0
  %v1338 = vmax.f32 %v1001, 0.0
  %v1339 = vmax.f32 %v1006, 0.0
  %v1340 = vmax.f32 %v1011, 0.0
  %v1341 = vmax.f32 %v1016, 0.0
  %v1342 = vmax.f32 %v1021, 0.0
  %v1343 = vmax.f32 %v1026, 0.0
  %v1344 = vmax.f32 %v1031, 0.0
  %v1345 = vmax.f32 %v1036, 0.0
  %v1346 = vmax.f32 %v1041, 0.0
  %v1347 = vmax.f32 %v1046, 0.0
  %v1348 = vmax.f32 %v1051, 0.0
  %v1349 = vmax.f32 %v1056, 0.0
  %v1350 = vmax.f32 %v1061, 0.0
  %v1351 = vmax.f32 %v1066, 0.0
  %v1352 = vmax.f32 %v1071, 0.0
  %v1353 = vmax.f32 %v1076, 0.0
  %v1354 = vmax.f32 %v1081, 0.0
  %v1355 = vmax.f32 %v1086, 0.0
  %v1356 = vmax.f32 %v1091, 0.0
  %v1357 = vmax.f32 %v1096, 0.0
  %v1358 = vmax.f32 %v1101, 0.0
  %v1359 = vmax.f32 %v1106, 0.0
  %v1360 = vmax.f32 %v1111, 0.0
  %v1361 = vmax.f32 %v1116, 0.0
  %v1362 = vmax.f32 %v1121, 0.0
  %v1363 = vmax.f32 %v1126, 0.0
  %v1364 = vmax.f32 %v1131, 0.0
  %v1365 = vmax.f32 %v1136, 0.0
  %v1366 = vmax.f32 %v1141, 0.0
  %v1367 = vmax.f32 %v1146, 0.0
  %v1368 = vmax.f32 %v1151, 0.0
  %v1369 = vmax.f32 %v1156, 0.0
  %v1370 = vmax.f32 %v1161, 0.0
  %v1371 = vmax.f32 %v1166, 0.0
  %v1372 = vmax.f32 %v1171, 0.0
  %v1373 = vmax.f32 %v1176, 0.0
  %v1374 = vmax.f32 %v1181, 0.0
  %v1375 = vmax.f32 %v1186, 0.0
  %v1376 = vmax.f32 %v1191, 0.0
  %v1377 = vmax.f32 %v1196, 0.0
  %v1378 = vmax.f32 %v1201, 0.0
  %v1379 = vmax.f32 %v1206, 0.0
  %v1380 = vmax.f32 %v1211, 0.0
  %v1381 = vmax.f32 %v1216, 0.0
  %v1382 = vmax.f32 %v1221, 0.0
  %v1383 = vmax.f32 %v1226, 0.0
  %v1384 = vmax.f32 %v1231, 0.0
  %v1385 = vmax.f32 %v1236, 0.0
  %v1386 = vmax.f32 %v1241, 0.0
  %v1387 = vmax.f32 %v1246, 0.0
  %v1388 = vmax.f32 %v1251, 0.0
  %v1389 = vmax.f32 %v1256, 0.0
  %v1390 = vmax.f32 %v1261, 0.0
  %v1391 = vmax.f32 %v1266, 0.0
  %v1392 = vmax.f32 %v1271, 0.0
  %v1393 = vmax.f32 %v1276, 0.0
  %v1394 = vmax.f32 %v1281, 0.0
  %v1395 = vmax.f32 %v1286, 0.0
  %v1396 = vmax.f32 %v1291, 0.0
  %v1397 = vmax.f32 %v1296, 0.0
  %v1398 = vmax.f32 %v1301, 0.0
  %v1399 = vmax.f32 %v1306, 0.0
  %v1400 = vmax.f32 %v1311, 0.0
  %v1401 = vmax.f32 %v1316, 0.0
  %v1402 = vmax.f32 %v1321, 0.0
  %v1403 = vmax.f32 %v1326, 0.0
  %v1404 = vld [vmem:[%s5] sm:$0xff]
  %v1405 = vld [vmem:[%s5 + $0x8] sm:$0xff]
  %v1406 = vld [vmem:[%s5 + $0x10] sm:$0xff]
  %v1407 = vld [vmem:[%s5 + $0x18] sm:$0xff]
  %v1408 = vld [vmem:[%s5 + $0x20] sm:$0xff]
  %v1409 = vld [vmem:[%s5 + $0x28] sm:$0xff]
  %v1410 = vld [vmem:[%s5 + $0x30] sm:$0xff]
  %v1411 = vld [vmem:[%s5 + $0x38] sm:$0xff]
  %v1412 = vld [vmem:[%s6] sm:$0x1]
  %v1414 = vlaneseq
  %v1415 = vshrl.u32 %v1414, 7
  %v1416 = vsub.s32 0, %v1415
  %v1417 = vrot.slane %v1412, %v1416
  %vm1419 = vcmask 523264
  %v1421 = vsel %vm1419, %v1329, 0
  %v1424 = vsel %vm1419, %v1330, 0
  %v1427 = vsel %vm1419, %v1331, 0
  %v1430 = vsel %vm1419, %v1332, 0
  %v1433 = vsel %vm1419, %v1333, 0
  %v1436 = vsel %vm1419, %v1334, 0
  %v1439 = vsel %vm1419, %v1335, 0
  %v1442 = vsel %vm1419, %v1336, 0
  %v1445 = vsel %vm1419, %v1337, 0
  %v1448 = vsel %vm1419, %v1338, 0
  %v1451 = vsel %vm1419, %v1339, 0
  %v1454 = vsel %vm1419, %v1340, 0
  %v1457 = vsel %vm1419, %v1341, 0
  %v1460 = vsel %vm1419, %v1342, 0
  %v1463 = vsel %vm1419, %v1343, 0
  %v1466 = vsel %vm1419, %v1344, 0
  %v1469 = vsel %vm1419, %v1345, 0
  %v1472 = vsel %vm1419, %v1346, 0
  %v1475 = vsel %vm1419, %v1347, 0
  %v1478 = vsel %vm1419, %v1348, 0
  %v1481 = vsel %vm1419, %v1349, 0
  %v1484 = vsel %vm1419, %v1350, 0
  %v1487 = vsel %vm1419, %v1351, 0
  %v1490 = vsel %vm1419, %v1352, 0
  %v1493 = vsel %vm1419, %v1353, 0
  %v1496 = vsel %vm1419, %v1354, 0
  %v1499 = vsel %vm1419, %v1355, 0
  %v1502 = vsel %vm1419, %v1356, 0
  %v1505 = vsel %vm1419, %v1357, 0
  %v1508 = vsel %vm1419, %v1358, 0
  %v1511 = vsel %vm1419, %v1359, 0
  %v1514 = vsel %vm1419, %v1360, 0
  %v1517 = vsel %vm1419, %v1361, 0
  %v1520 = vsel %vm1419, %v1362, 0
  %v1523 = vsel %vm1419, %v1363, 0
  %v1526 = vsel %vm1419, %v1364, 0
  %v1529 = vsel %vm1419, %v1365, 0
  %v1532 = vsel %vm1419, %v1366, 0
  %v1535 = vsel %vm1419, %v1367, 0
  %v1538 = vsel %vm1419, %v1368, 0
  %v1541 = vsel %vm1419, %v1369, 0
  %v1544 = vsel %vm1419, %v1370, 0
  %v1547 = vsel %vm1419, %v1371, 0
  %v1550 = vsel %vm1419, %v1372, 0
  %v1553 = vsel %vm1419, %v1373, 0
  %v1556 = vsel %vm1419, %v1374, 0
  %v1559 = vsel %vm1419, %v1375, 0
  %v1562 = vsel %vm1419, %v1376, 0
  %v1565 = vsel %vm1419, %v1377, 0
  %v1568 = vsel %vm1419, %v1378, 0
  %v1571 = vsel %vm1419, %v1379, 0
  %v1574 = vsel %vm1419, %v1380, 0
  %v1577 = vsel %vm1419, %v1381, 0
  %v1580 = vsel %vm1419, %v1382, 0
  %v1583 = vsel %vm1419, %v1383, 0
  %v1586 = vsel %vm1419, %v1384, 0
  %v1589 = vsel %vm1419, %v1385, 0
  %v1592 = vsel %vm1419, %v1386, 0
  %v1595 = vsel %vm1419, %v1387, 0
  %v1598 = vsel %vm1419, %v1388, 0
  %v1601 = vsel %vm1419, %v1389, 0
  %v1604 = vsel %vm1419, %v1390, 0
  %v1607 = vsel %vm1419, %v1391, 0
  %v1610 = vsel %vm1419, %v1392, 0
  %v1613 = vsel %vm1419, %v1393, 0
  %v1616 = vsel %vm1419, %v1394, 0
  %v1619 = vsel %vm1419, %v1395, 0
  %v1622 = vsel %vm1419, %v1396, 0
  %v1625 = vsel %vm1419, %v1397, 0
  %v1628 = vsel %vm1419, %v1398, 0
  %v1631 = vsel %vm1419, %v1399, 0
  %v1634 = vsel %vm1419, %v1400, 0
  %v1637 = vsel %vm1419, %v1401, 0
  %v1640 = vsel %vm1419, %v1402, 0
  %v1643 = vsel %vm1419, %v1403, 0
  %1645 = vmatprep.subr.mxu0 0.0
  %1646 = vmatpush1.msra.mxu0 %v1404
  %1647 = vmatprep.subr.mxu0 0.0
  %1648 = vmatpush1.msra.mxu0 %v1405
  %1649 = vmatprep.subr.mxu0 0.0
  %1650 = vmatpush1.msra.mxu0 %v1406
  %1651 = vmatprep.subr.mxu0 0.0
  %1652 = vmatpush1.msra.mxu0 %v1407
  %1653 = vmatprep.subr.mxu0 0.0
  %1654 = vmatpush1.msra.mxu0 %v1408
  %1655 = vmatprep.subr.mxu0 0.0
  %1656 = vmatpush1.msra.mxu0 %v1409
  %1657 = vmatprep.subr.mxu0 0.0
  %1658 = vmatpush1.msra.mxu0 %v1410
  %1659 = vmatprep.subr.mxu0 0.0
  %1660 = vmatpush1.msra.mxu0 %v1411
  %1661 = vmatprep.subr.mxu0 0.0
  %1662 = vmatpush1.msra.mxu0 0.0
  %1663 = vmatprep.subr.mxu0 0.0
  %1664 = vmatpush1.msra.mxu0 0.0
  %1665 = vmatprep.subr.mxu0 0.0
  %1666 = vmatpush1.msra.mxu0 0.0
  %1667 = vmatprep.subr.mxu0 0.0
  %1668 = vmatpush1.msra.mxu0 0.0
  %1669 = vmatprep.subr.mxu0 0.0
  %1670 = vmatpush1.msra.mxu0 0.0
  %1671 = vmatprep.subr.mxu0 0.0
  %1672 = vmatpush1.msra.mxu0 0.0
  %1673 = vmatprep.subr.mxu0 0.0
  %1674 = vmatpush1.msra.mxu0 0.0
  %1675 = vmatprep.subr.mxu0 0.0
  %1676 = vmatpush1.msra.mxu0 0.0
  %1677 = vmatprep.subr.mxu0 0.0
  %1678 = vmatpush1.msra.mxu0 0.0
  %1679 = vmatprep.subr.mxu0 0.0
  %1680 = vmatpush1.msra.mxu0 0.0
  %1681 = vmatprep.subr.mxu0 0.0
  %1682 = vmatpush1.msra.mxu0 0.0
  %1683 = vmatprep.subr.mxu0 0.0
  %1684 = vmatpush1.msra.mxu0 0.0
  %1685 = vmatprep.subr.mxu0 0.0
  %1686 = vmatpush1.msra.mxu0 0.0
  %1687 = vmatprep.subr.mxu0 0.0
  %1688 = vmatpush1.msra.mxu0 0.0
  %1689 = vmatprep.subr.mxu0 0.0
  %1690 = vmatpush1.msra.mxu0 0.0
  %1691 = vmatprep.subr.mxu0 0.0
  %1692 = vmatpush1.msra.mxu0 0.0
  %1693 = vmatprep.subr.mxu0 0.0
  %1694 = vmatpush1.msra.mxu0 0.0
  %1695 = vmatprep.subr.mxu0 0.0
  %1696 = vmatpush1.msra.mxu0 0.0
  %1697 = vmatprep.subr.mxu0 0.0
  %1698 = vmatpush1.msra.mxu0 0.0
  %1699 = vmatprep.subr.mxu0 0.0
  %1700 = vmatpush1.msra.mxu0 0.0
  %1701 = vmatprep.subr.mxu0 0.0
  %1702 = vmatpush1.msra.mxu0 0.0
  %1703 = vmatprep.subr.mxu0 0.0
  %1704 = vmatpush1.msra.mxu0 0.0
  %1705 = vmatprep.subr.mxu0 0.0
  %1706 = vmatpush1.msra.mxu0 0.0
  %1707 = vmatprep.subr.mxu0 0.0
  %1708 = vmatpush1.msra.mxu0 0.0
  %1709 = vmatprep.mubr.f32.mxu0 0.0
  %1710 = vmatmul.mubr.f32.gmra.mrb[0].mxu0 %v1421
  %v1711 = vpop.f32.mrb[0].mxu0
  %v1712 = vadd.f32 %v1417, %v1711
  %v1713 = vpop.f32.mrb[0].mxu0
  %1714 = vmatprep.mubr.f32.mxu0 0.0
  %1715 = vmatmul.mubr.f32.gmra.mrb[0].mxu0 %v1424
  %v1716 = vpop.f32.mrb[0].mxu0
  %v1717 = vadd.f32 %v1417, %v1716
  %v1718 = vpop.f32.mrb[0].mxu0
  %1719 = vmatprep.mubr.f32.mxu0 0.0
  %1720 = vmatmul.mubr.f32.gmra.mrb[0].mxu0 %v1427
  %v1721 = vpop.f32.mrb[0].mxu0
  %v1722 = vadd.f32 %v1417, %v1721
  %v1723 = vpop.f32.mrb[0].mxu0
  %1724 = vmatprep.mubr.f32.mxu0 0.0
  %1725 = vmatmul.mubr.f32.gmra.mrb[0].mxu0 %v1430
  %v1726 = vpop.f32.mrb[0].mxu0
  %v1727 = vadd.f32 %v1417, %v1726
  %v1728 = vpop.f32.mrb[0].mxu0
  %1729 = vmatprep.mubr.f32.mxu0 0.0
  %1730 = vmatmul.mubr.f32.gmra.mrb[0].mxu0 %v1433
  %v1731 = vpop.f32.mrb[0].mxu0
  %v1732 = vadd.f32 %v1417, %v1731
  %v1733 = vpop.f32.mrb[0].mxu0
  %1734 = vmatprep.mubr.f32.mxu0 0.0
  %1735 = vmatmul.mubr.f32.gmra.mrb[0].mxu0 %v1436
  %v1736 = vpop.f32.mrb[0].mxu0
  %v1737 = vadd.f32 %v1417, %v1736
  %v1738 = vpop.f32.mrb[0].mxu0
  %1739 = vmatprep.mubr.f32.mxu0 0.0
  %1740 = vmatmul.mubr.f32.gmra.mrb[0].mxu0 %v1439
  %v1741 = vpop.f32.mrb[0].mxu0
  %v1742 = vadd.f32 %v1417, %v1741
  %v1743 = vpop.f32.mrb[0].mxu0
  %1744 = vmatprep.mubr.f32.mxu0 0.0
  %1745 = vmatmul.mubr.f32.gmra.mrb[0].mxu0 %v1442
  %v1746 = vpop.f32.mrb[0].mxu0
  %v1747 = vadd.f32 %v1417, %v1746
  %v1748 = vpop.f32.mrb[0].mxu0
  %1749 = vmatprep.mubr.f32.mxu0 0.0
  %1750 = vmatmul.mubr.f32.gmra.mrb[0].mxu0 %v1445
  %v1751 = vpop.f32.mrb[0].mxu0
  %v1752 = vadd.f32 %v1417, %v1751
  %v1753 = vpop.f32.mrb[0].mxu0
  %1754 = vmatprep.mubr.f32.mxu0 0.0
  %1755 = vmatmul.mubr.f32.gmra.mrb[0].mxu0 %v1448
  %v1756 = vpop.f32.mrb[0].mxu0
  %v1757 = vadd.f32 %v1417, %v1756
  %v1758 = vpop.f32.mrb[0].mxu0
  %1759 = vmatprep.mubr.f32.mxu0 0.0
  %1760 = vmatmul.mubr.f32.gmra.mrb[0].mxu0 %v1451
  %v1761 = vpop.f32.mrb[0].mxu0
  %v1762 = vadd.f32 %v1417, %v1761
  %v1763 = vpop.f32.mrb[0].mxu0
  %1764 = vmatprep.mubr.f32.mxu0 0.0
  %1765 = vmatmul.mubr.f32.gmra.mrb[0].mxu0 %v1454
  %v1766 = vpop.f32.mrb[0].mxu0
  %v1767 = vadd.f32 %v1417, %v1766
  %v1768 = vpop.f32.mrb[0].mxu0
  %1769 = vmatprep.mubr.f32.mxu0 0.0
  %1770 = vmatmul.mubr.f32.gmra.mrb[0].mxu0 %v1457
  %v1771 = vpop.f32.mrb[0].mxu0
  %v1772 = vadd.f32 %v1417, %v1771
  %v1773 = vpop.f32.mrb[0].mxu0
  %1774 = vmatprep.mubr.f32.mxu0 0.0
  %1775 = vmatmul.mubr.f32.gmra.mrb[0].mxu0 %v1460
  %v1776 = vpop.f32.mrb[0].mxu0
  %v1777 = vadd.f32 %v1417, %v1776
  %v1778 = vpop.f32.mrb[0].mxu0
  %1779 = vmatprep.mubr.f32.mxu0 0.0
  %1780 = vmatmul.mubr.f32.gmra.mrb[0].mxu0 %v1463
  %v1781 = vpop.f32.mrb[0].mxu0
  %v1782 = vadd.f32 %v1417, %v1781
  %v1783 = vpop.f32.mrb[0].mxu0
  %1784 = vmatprep.mubr.f32.mxu0 0.0
  %1785 = vmatmul.mubr.f32.gmra.mrb[0].mxu0 %v1466
  %v1786 = vpop.f32.mrb[0].mxu0
  %v1787 = vadd.f32 %v1417, %v1786
  %v1788 = vpop.f32.mrb[0].mxu0
  %1789 = vmatprep.mubr.f32.mxu0 0.0
  %1790 = vmatmul.mubr.f32.gmra.mrb[0].mxu0 %v1469
  %v1791 = vpop.f32.mrb[0].mxu0
  %v1792 = vadd.f32 %v1417, %v1791
  %v1793 = vpop.f32.mrb[0].mxu0
  %1794 = vmatprep.mubr.f32.mxu0 0.0
  %1795 = vmatmul.mubr.f32.gmra.mrb[0].mxu0 %v1472
  %v1796 = vpop.f32.mrb[0].mxu0
  %v1797 = vadd.f32 %v1417, %v1796
  %v1798 = vpop.f32.mrb[0].mxu0
  %1799 = vmatprep.mubr.f32.mxu0 0.0
  %1800 = vmatmul.mubr.f32.gmra.mrb[0].mxu0 %v1475
  %v1801 = vpop.f32.mrb[0].mxu0
  %v1802 = vadd.f32 %v1417, %v1801
  %v1803 = vpop.f32.mrb[0].mxu0
  %1804 = vmatprep.mubr.f32.mxu0 0.0
  %1805 = vmatmul.mubr.f32.gmra.mrb[0].mxu0 %v1478
  %v1806 = vpop.f32.mrb[0].mxu0
  %v1807 = vadd.f32 %v1417, %v1806
  %v1808 = vpop.f32.mrb[0].mxu0
  %1809 = vmatprep.mubr.f32.mxu0 0.0
  %1810 = vmatmul.mubr.f32.gmra.mrb[0].mxu0 %v1481
  %v1811 = vpop.f32.mrb[0].mxu0
  %v1812 = vadd.f32 %v1417, %v1811
  %v1813 = vpop.f32.mrb[0].mxu0
  %1814 = vmatprep.mubr.f32.mxu0 0.0
  %1815 = vmatmul.mubr.f32.gmra.mrb[0].mxu0 %v1484
  %v1816 = vpop.f32.mrb[0].mxu0
  %v1817 = vadd.f32 %v1417, %v1816
  %v1818 = vpop.f32.mrb[0].mxu0
  %1819 = vmatprep.mubr.f32.mxu0 0.0
  %1820 = vmatmul.mubr.f32.gmra.mrb[0].mxu0 %v1487
  %v1821 = vpop.f32.mrb[0].mxu0
  %v1822 = vadd.f32 %v1417, %v1821
  %v1823 = vpop.f32.mrb[0].mxu0
  %1824 = vmatprep.mubr.f32.mxu0 0.0
  %1825 = vmatmul.mubr.f32.gmra.mrb[0].mxu0 %v1490
  %v1826 = vpop.f32.mrb[0].mxu0
  %v1827 = vadd.f32 %v1417, %v1826
  %v1828 = vpop.f32.mrb[0].mxu0
  %1829 = vmatprep.mubr.f32.mxu0 0.0
  %1830 = vmatmul.mubr.f32.gmra.mrb[0].mxu0 %v1493
  %v1831 = vpop.f32.mrb[0].mxu0
  %v1832 = vadd.f32 %v1417, %v1831
  %v1833 = vpop.f32.mrb[0].mxu0
  %1834 = vmatprep.mubr.f32.mxu0 0.0
  %1835 = vmatmul.mubr.f32.gmra.mrb[0].mxu0 %v1496
  %v1836 = vpop.f32.mrb[0].mxu0
  %v1837 = vadd.f32 %v1417, %v1836
  %v1838 = vpop.f32.mrb[0].mxu0
  %1839 = vmatprep.mubr.f32.mxu0 0.0
  %1840 = vmatmul.mubr.f32.gmra.mrb[0].mxu0 %v1499
  %v1841 = vpop.f32.mrb[0].mxu0
  %v1842 = vadd.f32 %v1417, %v1841
  %v1843 = vpop.f32.mrb[0].mxu0
  %1844 = vmatprep.mubr.f32.mxu0 0.0
  %1845 = vmatmul.mubr.f32.gmra.mrb[0].mxu0 %v1502
  %v1846 = vpop.f32.mrb[0].mxu0
  %v1847 = vadd.f32 %v1417, %v1846
  %v1848 = vpop.f32.mrb[0].mxu0
  %1849 = vmatprep.mubr.f32.mxu0 0.0
  %1850 = vmatmul.mubr.f32.gmra.mrb[0].mxu0 %v1505
  %v1851 = vpop.f32.mrb[0].mxu0
  %v1852 = vadd.f32 %v1417, %v1851
  %v1853 = vpop.f32.mrb[0].mxu0
  %1854 = vmatprep.mubr.f32.mxu0 0.0
  %1855 = vmatmul.mubr.f32.gmra.mrb[0].mxu0 %v1508
  %v1856 = vpop.f32.mrb[0].mxu0
  %v1857 = vadd.f32 %v1417, %v1856
  %v1858 = vpop.f32.mrb[0].mxu0
  %1859 = vmatprep.mubr.f32.mxu0 0.0
  %1860 = vmatmul.mubr.f32.gmra.mrb[0].mxu0 %v1511
  %v1861 = vpop.f32.mrb[0].mxu0
  %v1862 = vadd.f32 %v1417, %v1861
  %v1863 = vpop.f32.mrb[0].mxu0
  %1864 = vmatprep.mubr.f32.mxu0 0.0
  %1865 = vmatmul.mubr.f32.gmra.mrb[0].mxu0 %v1514
  %v1866 = vpop.f32.mrb[0].mxu0
  %v1867 = vadd.f32 %v1417, %v1866
  %v1868 = vpop.f32.mrb[0].mxu0
  %1869 = vmatprep.mubr.f32.mxu0 0.0
  %1870 = vmatmul.mubr.f32.gmra.mrb[0].mxu0 %v1517
  %v1871 = vpop.f32.mrb[0].mxu0
  %v1872 = vadd.f32 %v1417, %v1871
  %v1873 = vpop.f32.mrb[0].mxu0
  %1874 = vmatprep.mubr.f32.mxu0 0.0
  %1875 = vmatmul.mubr.f32.gmra.mrb[0].mxu0 %v1520
  %v1876 = vpop.f32.mrb[0].mxu0
  %v1877 = vadd.f32 %v1417, %v1876
  %v1878 = vpop.f32.mrb[0].mxu0
  %1879 = vmatprep.mubr.f32.mxu0 0.0
  %1880 = vmatmul.mubr.f32.gmra.mrb[0].mxu0 %v1523
  %v1881 = vpop.f32.mrb[0].mxu0
  %v1882 = vadd.f32 %v1417, %v1881
  %v1883 = vpop.f32.mrb[0].mxu0
  %1884 = vmatprep.mubr.f32.mxu0 0.0
  %1885 = vmatmul.mubr.f32.gmra.mrb[0].mxu0 %v1526
  %v1886 = vpop.f32.mrb[0].mxu0
  %v1887 = vadd.f32 %v1417, %v1886
  %v1888 = vpop.f32.mrb[0].mxu0
  %1889 = vmatprep.mubr.f32.mxu0 0.0
  %1890 = vmatmul.mubr.f32.gmra.mrb[0].mxu0 %v1529
  %v1891 = vpop.f32.mrb[0].mxu0
  %v1892 = vadd.f32 %v1417, %v1891
  %v1893 = vpop.f32.mrb[0].mxu0
  %1894 = vmatprep.mubr.f32.mxu0 0.0
  %1895 = vmatmul.mubr.f32.gmra.mrb[0].mxu0 %v1532
  %v1896 = vpop.f32.mrb[0].mxu0
  %v1897 = vadd.f32 %v1417, %v1896
  %v1898 = vpop.f32.mrb[0].mxu0
  %1899 = vmatprep.mubr.f32.mxu0 0.0
  %1900 = vmatmul.mubr.f32.gmra.mrb[0].mxu0 %v1535
  %v1901 = vpop.f32.mrb[0].mxu0
  %v1902 = vadd.f32 %v1417, %v1901
  %v1903 = vpop.f32.mrb[0].mxu0
  %1904 = vmatprep.mubr.f32.mxu0 0.0
  %1905 = vmatmul.mubr.f32.gmra.mrb[0].mxu0 %v1538
  %v1906 = vpop.f32.mrb[0].mxu0
  %v1907 = vadd.f32 %v1417, %v1906
  %v1908 = vpop.f32.mrb[0].mxu0
  %1909 = vmatprep.mubr.f32.mxu0 0.0
  %1910 = vmatmul.mubr.f32.gmra.mrb[0].mxu0 %v1541
  %v1911 = vpop.f32.mrb[0].mxu0
  %v1912 = vadd.f32 %v1417, %v1911
  %v1913 = vpop.f32.mrb[0].mxu0
  %1914 = vmatprep.mubr.f32.mxu0 0.0
  %1915 = vmatmul.mubr.f32.gmra.mrb[0].mxu0 %v1544
  %v1916 = vpop.f32.mrb[0].mxu0
  %v1917 = vadd.f32 %v1417, %v1916
  %v1918 = vpop.f32.mrb[0].mxu0
  %1919 = vmatprep.mubr.f32.mxu0 0.0
  %1920 = vmatmul.mubr.f32.gmra.mrb[0].mxu0 %v1547
  %v1921 = vpop.f32.mrb[0].mxu0
  %v1922 = vadd.f32 %v1417, %v1921
  %v1923 = vpop.f32.mrb[0].mxu0
  %1924 = vmatprep.mubr.f32.mxu0 0.0
  %1925 = vmatmul.mubr.f32.gmra.mrb[0].mxu0 %v1550
  %v1926 = vpop.f32.mrb[0].mxu0
  %v1927 = vadd.f32 %v1417, %v1926
  %v1928 = vpop.f32.mrb[0].mxu0
  %1929 = vmatprep.mubr.f32.mxu0 0.0
  %1930 = vmatmul.mubr.f32.gmra.mrb[0].mxu0 %v1553
  %v1931 = vpop.f32.mrb[0].mxu0
  %v1932 = vadd.f32 %v1417, %v1931
  %v1933 = vpop.f32.mrb[0].mxu0
  %1934 = vmatprep.mubr.f32.mxu0 0.0
  %1935 = vmatmul.mubr.f32.gmra.mrb[0].mxu0 %v1556
  %v1936 = vpop.f32.mrb[0].mxu0
  %v1937 = vadd.f32 %v1417, %v1936
  %v1938 = vpop.f32.mrb[0].mxu0
  %1939 = vmatprep.mubr.f32.mxu0 0.0
  %1940 = vmatmul.mubr.f32.gmra.mrb[0].mxu0 %v1559
  %v1941 = vpop.f32.mrb[0].mxu0
  %v1942 = vadd.f32 %v1417, %v1941
  %v1943 = vpop.f32.mrb[0].mxu0
  %1944 = vmatprep.mubr.f32.mxu0 0.0
  %1945 = vmatmul.mubr.f32.gmra.mrb[0].mxu0 %v1562
  %v1946 = vpop.f32.mrb[0].mxu0
  %v1947 = vadd.f32 %v1417, %v1946
  %v1948 = vpop.f32.mrb[0].mxu0
  %1949 = vmatprep.mubr.f32.mxu0 0.0
  %1950 = vmatmul.mubr.f32.gmra.mrb[0].mxu0 %v1565
  %v1951 = vpop.f32.mrb[0].mxu0
  %v1952 = vadd.f32 %v1417, %v1951
  %v1953 = vpop.f32.mrb[0].mxu0
  %1954 = vmatprep.mubr.f32.mxu0 0.0
  %1955 = vmatmul.mubr.f32.gmra.mrb[0].mxu0 %v1568
  %v1956 = vpop.f32.mrb[0].mxu0
  %v1957 = vadd.f32 %v1417, %v1956
  %v1958 = vpop.f32.mrb[0].mxu0
  %1959 = vmatprep.mubr.f32.mxu0 0.0
  %1960 = vmatmul.mubr.f32.gmra.mrb[0].mxu0 %v1571
  %v1961 = vpop.f32.mrb[0].mxu0
  %v1962 = vadd.f32 %v1417, %v1961
  %v1963 = vpop.f32.mrb[0].mxu0
  %1964 = vmatprep.mubr.f32.mxu0 0.0
  %1965 = vmatmul.mubr.f32.gmra.mrb[0].mxu0 %v1574
  %v1966 = vpop.f32.mrb[0].mxu0
  %v1967 = vadd.f32 %v1417, %v1966
  %v1968 = vpop.f32.mrb[0].mxu0
  %1969 = vmatprep.mubr.f32.mxu0 0.0
  %1970 = vmatmul.mubr.f32.gmra.mrb[0].mxu0 %v1577
  %v1971 = vpop.f32.mrb[0].mxu0
  %v1972 = vadd.f32 %v1417, %v1971
  %v1973 = vpop.f32.mrb[0].mxu0
  %1974 = vmatprep.mubr.f32.mxu0 0.0
  %1975 = vmatmul.mubr.f32.gmra.mrb[0].mxu0 %v1580
  %v1976 = vpop.f32.mrb[0].mxu0
  %v1977 = vadd.f32 %v1417, %v1976
  %v1978 = vpop.f32.mrb[0].mxu0
  %1979 = vmatprep.mubr.f32.mxu0 0.0
  %1980 = vmatmul.mubr.f32.gmra.mrb[0].mxu0 %v1583
  %v1981 = vpop.f32.mrb[0].mxu0
  %v1982 = vadd.f32 %v1417, %v1981
  %v1983 = vpop.f32.mrb[0].mxu0
  %1984 = vmatprep.mubr.f32.mxu0 0.0
  %1985 = vmatmul.mubr.f32.gmra.mrb[0].mxu0 %v1586
  %v1986 = vpop.f32.mrb[0].mxu0
  %v1987 = vadd.f32 %v1417, %v1986
  %v1988 = vpop.f32.mrb[0].mxu0
  %1989 = vmatprep.mubr.f32.mxu0 0.0
  %1990 = vmatmul.mubr.f32.gmra.mrb[0].mxu0 %v1589
  %v1991 = vpop.f32.mrb[0].mxu0
  %v1992 = vadd.f32 %v1417, %v1991
  %v1993 = vpop.f32.mrb[0].mxu0
  %1994 = vmatprep.mubr.f32.mxu0 0.0
  %1995 = vmatmul.mubr.f32.gmra.mrb[0].mxu0 %v1592
  %v1996 = vpop.f32.mrb[0].mxu0
  %v1997 = vadd.f32 %v1417, %v1996
  %v1998 = vpop.f32.mrb[0].mxu0
  %1999 = vmatprep.mubr.f32.mxu0 0.0
  %2000 = vmatmul.mubr.f32.gmra.mrb[0].mxu0 %v1595
  %v2001 = vpop.f32.mrb[0].mxu0
  %v2002 = vadd.f32 %v1417, %v2001
  %v2003 = vpop.f32.mrb[0].mxu0
  %2004 = vmatprep.mubr.f32.mxu0 0.0
  %2005 = vmatmul.mubr.f32.gmra.mrb[0].mxu0 %v1598
  %v2006 = vpop.f32.mrb[0].mxu0
  %v2007 = vadd.f32 %v1417, %v2006
  %v2008 = vpop.f32.mrb[0].mxu0
  %2009 = vmatprep.mubr.f32.mxu0 0.0
  %2010 = vmatmul.mubr.f32.gmra.mrb[0].mxu0 %v1601
  %v2011 = vpop.f32.mrb[0].mxu0
  %v2012 = vadd.f32 %v1417, %v2011
  %v2013 = vpop.f32.mrb[0].mxu0
  %2014 = vmatprep.mubr.f32.mxu0 0.0
  %2015 = vmatmul.mubr.f32.gmra.mrb[0].mxu0 %v1604
  %v2016 = vpop.f32.mrb[0].mxu0
  %v2017 = vadd.f32 %v1417, %v2016
  %v2018 = vpop.f32.mrb[0].mxu0
  %2019 = vmatprep.mubr.f32.mxu0 0.0
  %2020 = vmatmul.mubr.f32.gmra.mrb[0].mxu0 %v1607
  %v2021 = vpop.f32.mrb[0].mxu0
  %v2022 = vadd.f32 %v1417, %v2021
  %v2023 = vpop.f32.mrb[0].mxu0
  %2024 = vmatprep.mubr.f32.mxu0 0.0
  %2025 = vmatmul.mubr.f32.gmra.mrb[0].mxu0 %v1610
  %v2026 = vpop.f32.mrb[0].mxu0
  %v2027 = vadd.f32 %v1417, %v2026
  %v2028 = vpop.f32.mrb[0].mxu0
  %2029 = vmatprep.mubr.f32.mxu0 0.0
  %2030 = vmatmul.mubr.f32.gmra.mrb[0].mxu0 %v1613
  %v2031 = vpop.f32.mrb[0].mxu0
  %v2032 = vadd.f32 %v1417, %v2031
  %v2033 = vpop.f32.mrb[0].mxu0
  %2034 = vmatprep.mubr.f32.mxu0 0.0
  %2035 = vmatmul.mubr.f32.gmra.mrb[0].mxu0 %v1616
  %v2036 = vpop.f32.mrb[0].mxu0
  %v2037 = vadd.f32 %v1417, %v2036
  %v2038 = vpop.f32.mrb[0].mxu0
  %2039 = vmatprep.mubr.f32.mxu0 0.0
  %2040 = vmatmul.mubr.f32.gmra.mrb[0].mxu0 %v1619
  %v2041 = vpop.f32.mrb[0].mxu0
  %v2042 = vadd.f32 %v1417, %v2041
  %v2043 = vpop.f32.mrb[0].mxu0
  %2044 = vmatprep.mubr.f32.mxu0 0.0
  %2045 = vmatmul.mubr.f32.gmra.mrb[0].mxu0 %v1622
  %v2046 = vpop.f32.mrb[0].mxu0
  %v2047 = vadd.f32 %v1417, %v2046
  %v2048 = vpop.f32.mrb[0].mxu0
  %2049 = vmatprep.mubr.f32.mxu0 0.0
  %2050 = vmatmul.mubr.f32.gmra.mrb[0].mxu0 %v1625
  %v2051 = vpop.f32.mrb[0].mxu0
  %v2052 = vadd.f32 %v1417, %v2051
  %v2053 = vpop.f32.mrb[0].mxu0
  %2054 = vmatprep.mubr.f32.mxu0 0.0
  %2055 = vmatmul.mubr.f32.gmra.mrb[0].mxu0 %v1628
  %v2056 = vpop.f32.mrb[0].mxu0
  %v2057 = vadd.f32 %v1417, %v2056
  %v2058 = vpop.f32.mrb[0].mxu0
  %2059 = vmatprep.mubr.f32.mxu0 0.0
  %2060 = vmatmul.mubr.f32.gmra.mrb[0].mxu0 %v1631
  %v2061 = vpop.f32.mrb[0].mxu0
  %v2062 = vadd.f32 %v1417, %v2061
  %v2063 = vpop.f32.mrb[0].mxu0
  %2064 = vmatprep.mubr.f32.mxu0 0.0
  %2065 = vmatmul.mubr.f32.gmra.mrb[0].mxu0 %v1634
  %v2066 = vpop.f32.mrb[0].mxu0
  %v2067 = vadd.f32 %v1417, %v2066
  %v2068 = vpop.f32.mrb[0].mxu0
  %2069 = vmatprep.mubr.f32.mxu0 0.0
  %2070 = vmatmul.mubr.f32.gmra.mrb[0].mxu0 %v1637
  %v2071 = vpop.f32.mrb[0].mxu0
  %v2072 = vadd.f32 %v1417, %v2071
  %v2073 = vpop.f32.mrb[0].mxu0
  %2074 = vmatprep.mubr.f32.mxu0 0.0
  %2075 = vmatmul.mubr.f32.gmra.mrb[0].mxu0 %v1640
  %v2076 = vpop.f32.mrb[0].mxu0
  %v2077 = vadd.f32 %v1417, %v2076
  %v2078 = vpop.f32.mrb[0].mxu0
  %2079 = vmatprep.mubr.f32.mxu0 0.0
  %2080 = vmatmul.mubr.f32.gmra.mrb[0].mxu0 %v1643
  %v2081 = vpop.f32.mrb[0].mxu0
  %v2082 = vadd.f32 %v1417, %v2081
  %v2083 = vpop.f32.mrb[0].mxu0
  %2084 = vdwg.mxu0
  %v2085 = vmax.f32 %v1712, 0.0
  %v2086 = vmax.f32 %v1717, 0.0
  %v2087 = vmax.f32 %v1722, 0.0
  %v2088 = vmax.f32 %v1727, 0.0
  %v2089 = vmax.f32 %v1732, 0.0
  %v2090 = vmax.f32 %v1737, 0.0
  %v2091 = vmax.f32 %v1742, 0.0
  %v2092 = vmax.f32 %v1747, 0.0
  %v2093 = vmax.f32 %v1752, 0.0
  %v2094 = vmax.f32 %v1757, 0.0
  %v2095 = vmax.f32 %v1762, 0.0
  %v2096 = vmax.f32 %v1767, 0.0
  %v2097 = vmax.f32 %v1772, 0.0
  %v2098 = vmax.f32 %v1777, 0.0
  %v2099 = vmax.f32 %v1782, 0.0
  %v2100 = vmax.f32 %v1787, 0.0
  %v2101 = vmax.f32 %v1792, 0.0
  %v2102 = vmax.f32 %v1797, 0.0
  %v2103 = vmax.f32 %v1802, 0.0
  %v2104 = vmax.f32 %v1807, 0.0
  %v2105 = vmax.f32 %v1812, 0.0
  %v2106 = vmax.f32 %v1817, 0.0
  %v2107 = vmax.f32 %v1822, 0.0
  %v2108 = vmax.f32 %v1827, 0.0
  %v2109 = vmax.f32 %v1832, 0.0
  %v2110 = vmax.f32 %v1837, 0.0
  %v2111 = vmax.f32 %v1842, 0.0
  %v2112 = vmax.f32 %v1847, 0.0
  %v2113 = vmax.f32 %v1852, 0.0
  %v2114 = vmax.f32 %v1857, 0.0
  %v2115 = vmax.f32 %v1862, 0.0
  %v2116 = vmax.f32 %v1867, 0.0
  %v2117 = vmax.f32 %v1872, 0.0
  %v2118 = vmax.f32 %v1877, 0.0
  %v2119 = vmax.f32 %v1882, 0.0
  %v2120 = vmax.f32 %v1887, 0.0
  %v2121 = vmax.f32 %v1892, 0.0
  %v2122 = vmax.f32 %v1897, 0.0
  %v2123 = vmax.f32 %v1902, 0.0
  %v2124 = vmax.f32 %v1907, 0.0
  %v2125 = vmax.f32 %v1912, 0.0
  %v2126 = vmax.f32 %v1917, 0.0
  %v2127 = vmax.f32 %v1922, 0.0
  %v2128 = vmax.f32 %v1927, 0.0
  %v2129 = vmax.f32 %v1932, 0.0
  %v2130 = vmax.f32 %v1937, 0.0
  %v2131 = vmax.f32 %v1942, 0.0
  %v2132 = vmax.f32 %v1947, 0.0
  %v2133 = vmax.f32 %v1952, 0.0
  %v2134 = vmax.f32 %v1957, 0.0
  %v2135 = vmax.f32 %v1962, 0.0
  %v2136 = vmax.f32 %v1967, 0.0
  %v2137 = vmax.f32 %v1972, 0.0
  %v2138 = vmax.f32 %v1977, 0.0
  %v2139 = vmax.f32 %v1982, 0.0
  %v2140 = vmax.f32 %v1987, 0.0
  %v2141 = vmax.f32 %v1992, 0.0
  %v2142 = vmax.f32 %v1997, 0.0
  %v2143 = vmax.f32 %v2002, 0.0
  %v2144 = vmax.f32 %v2007, 0.0
  %v2145 = vmax.f32 %v2012, 0.0
  %v2146 = vmax.f32 %v2017, 0.0
  %v2147 = vmax.f32 %v2022, 0.0
  %v2148 = vmax.f32 %v2027, 0.0
  %v2149 = vmax.f32 %v2032, 0.0
  %v2150 = vmax.f32 %v2037, 0.0
  %v2151 = vmax.f32 %v2042, 0.0
  %v2152 = vmax.f32 %v2047, 0.0
  %v2153 = vmax.f32 %v2052, 0.0
  %v2154 = vmax.f32 %v2057, 0.0
  %v2155 = vmax.f32 %v2062, 0.0
  %v2156 = vmax.f32 %v2067, 0.0
  %v2157 = vmax.f32 %v2072, 0.0
  %v2158 = vmax.f32 %v2077, 0.0
  %v2159 = vmax.f32 %v2082, 0.0
  %v2160 = vld [vmem:[%s7] sm:$0x1]
  %v2162 = vlaneseq
  %v2163 = vshrl.u32 %v2162, 7
  %v2164 = vsub.s32 0, %v2163
  %v2165 = vrot.slane %v2160, %v2164
  %v2167 = vmul.f32 %v2085, %v2165
  %v2168 = vmul.f32 %v2086, %v2165
  %v2169 = vmul.f32 %v2087, %v2165
  %v2170 = vmul.f32 %v2088, %v2165
  %v2171 = vmul.f32 %v2089, %v2165
  %v2172 = vmul.f32 %v2090, %v2165
  %v2173 = vmul.f32 %v2091, %v2165
  %v2174 = vmul.f32 %v2092, %v2165
  %v2175 = vmul.f32 %v2093, %v2165
  %v2176 = vmul.f32 %v2094, %v2165
  %v2177 = vmul.f32 %v2095, %v2165
  %v2178 = vmul.f32 %v2096, %v2165
  %v2179 = vmul.f32 %v2097, %v2165
  %v2180 = vmul.f32 %v2098, %v2165
  %v2181 = vmul.f32 %v2099, %v2165
  %v2182 = vmul.f32 %v2100, %v2165
  %v2183 = vmul.f32 %v2101, %v2165
  %v2184 = vmul.f32 %v2102, %v2165
  %v2185 = vmul.f32 %v2103, %v2165
  %v2186 = vmul.f32 %v2104, %v2165
  %v2187 = vmul.f32 %v2105, %v2165
  %v2188 = vmul.f32 %v2106, %v2165
  %v2189 = vmul.f32 %v2107, %v2165
  %v2190 = vmul.f32 %v2108, %v2165
  %v2191 = vmul.f32 %v2109, %v2165
  %v2192 = vmul.f32 %v2110, %v2165
  %v2193 = vmul.f32 %v2111, %v2165
  %v2194 = vmul.f32 %v2112, %v2165
  %v2195 = vmul.f32 %v2113, %v2165
  %v2196 = vmul.f32 %v2114, %v2165
  %v2197 = vmul.f32 %v2115, %v2165
  %v2198 = vmul.f32 %v2116, %v2165
  %v2199 = vmul.f32 %v2117, %v2165
  %v2200 = vmul.f32 %v2118, %v2165
  %v2201 = vmul.f32 %v2119, %v2165
  %v2202 = vmul.f32 %v2120, %v2165
  %v2203 = vmul.f32 %v2121, %v2165
  %v2204 = vmul.f32 %v2122, %v2165
  %v2205 = vmul.f32 %v2123, %v2165
  %v2206 = vmul.f32 %v2124, %v2165
  %v2207 = vmul.f32 %v2125, %v2165
  %v2208 = vmul.f32 %v2126, %v2165
  %v2209 = vmul.f32 %v2127, %v2165
  %v2210 = vmul.f32 %v2128, %v2165
  %v2211 = vmul.f32 %v2129, %v2165
  %v2212 = vmul.f32 %v2130, %v2165
  %v2213 = vmul.f32 %v2131, %v2165
  %v2214 = vmul.f32 %v2132, %v2165
  %v2215 = vmul.f32 %v2133, %v2165
  %v2216 = vmul.f32 %v2134, %v2165
  %v2217 = vmul.f32 %v2135, %v2165
  %v2218 = vmul.f32 %v2136, %v2165
  %v2219 = vmul.f32 %v2137, %v2165
  %v2220 = vmul.f32 %v2138, %v2165
  %v2221 = vmul.f32 %v2139, %v2165
  %v2222 = vmul.f32 %v2140, %v2165
  %v2223 = vmul.f32 %v2141, %v2165
  %v2224 = vmul.f32 %v2142, %v2165
  %v2225 = vmul.f32 %v2143, %v2165
  %v2226 = vmul.f32 %v2144, %v2165
  %v2227 = vmul.f32 %v2145, %v2165
  %v2228 = vmul.f32 %v2146, %v2165
  %v2229 = vmul.f32 %v2147, %v2165
  %v2230 = vmul.f32 %v2148, %v2165
  %v2231 = vmul.f32 %v2149, %v2165
  %v2232 = vmul.f32 %v2150, %v2165
  %v2233 = vmul.f32 %v2151, %v2165
  %v2234 = vmul.f32 %v2152, %v2165
  %v2235 = vmul.f32 %v2153, %v2165
  %v2236 = vmul.f32 %v2154, %v2165
  %v2237 = vmul.f32 %v2155, %v2165
  %v2238 = vmul.f32 %v2156, %v2165
  %v2239 = vmul.f32 %v2157, %v2165
  %v2240 = vmul.f32 %v2158, %v2165
  %v2241 = vmul.f32 %v2159, %v2165
  %vm2242 = vcmask 261120
  %v2243 = vsel %vm2242, %v2167, 0.0
  %2244 = vadd.xlane.f32.xlu0 %v2243
  %v2245 = vpop.xlane.xlu0 %2244
  %v2246 = vsel %vm2242, %v2168, 0.0
  %2247 = vadd.xlane.f32.xlu0 %v2246
  %v2248 = vpop.xlane.xlu0 %2247
  %v2249 = vsel %vm2242, %v2169, 0.0
  %2250 = vadd.xlane.f32.xlu0 %v2249
  %v2251 = vpop.xlane.xlu0 %2250
  %v2252 = vsel %vm2242, %v2170, 0.0
  %2253 = vadd.xlane.f32.xlu0 %v2252
  %v2254 = vpop.xlane.xlu0 %2253
  %v2255 = vsel %vm2242, %v2171, 0.0
  %2256 = vadd.xlane.f32.xlu0 %v2255
  %v2257 = vpop.xlane.xlu0 %2256
  %v2258 = vsel %vm2242, %v2172, 0.0
  %2259 = vadd.xlane.f32.xlu0 %v2258
  %v2260 = vpop.xlane.xlu0 %2259
  %v2261 = vsel %vm2242, %v2173, 0.0
  %2262 = vadd.xlane.f32.xlu0 %v2261
  %v2263 = vpop.xlane.xlu0 %2262
  %v2264 = vsel %vm2242, %v2174, 0.0
  %2265 = vadd.xlane.f32.xlu0 %v2264
  %v2266 = vpop.xlane.xlu0 %2265
  %v2267 = vsel %vm2242, %v2175, 0.0
  %2268 = vadd.xlane.f32.xlu0 %v2267
  %v2269 = vpop.xlane.xlu0 %2268
  %v2270 = vsel %vm2242, %v2176, 0.0
  %2271 = vadd.xlane.f32.xlu0 %v2270
  %v2272 = vpop.xlane.xlu0 %2271
  %v2273 = vsel %vm2242, %v2177, 0.0
  %2274 = vadd.xlane.f32.xlu0 %v2273
  %v2275 = vpop.xlane.xlu0 %2274
  %v2276 = vsel %vm2242, %v2178, 0.0
  %2277 = vadd.xlane.f32.xlu0 %v2276
  %v2278 = vpop.xlane.xlu0 %2277
  %v2279 = vsel %vm2242, %v2179, 0.0
  %2280 = vadd.xlane.f32.xlu0 %v2279
  %v2281 = vpop.xlane.xlu0 %2280
  %v2282 = vsel %vm2242, %v2180, 0.0
  %2283 = vadd.xlane.f32.xlu0 %v2282
  %v2284 = vpop.xlane.xlu0 %2283
  %v2285 = vsel %vm2242, %v2181, 0.0
  %2286 = vadd.xlane.f32.xlu0 %v2285
  %v2287 = vpop.xlane.xlu0 %2286
  %v2288 = vsel %vm2242, %v2182, 0.0
  %2289 = vadd.xlane.f32.xlu0 %v2288
  %v2290 = vpop.xlane.xlu0 %2289
  %v2291 = vsel %vm2242, %v2183, 0.0
  %2292 = vadd.xlane.f32.xlu0 %v2291
  %v2293 = vpop.xlane.xlu0 %2292
  %v2294 = vsel %vm2242, %v2184, 0.0
  %2295 = vadd.xlane.f32.xlu0 %v2294
  %v2296 = vpop.xlane.xlu0 %2295
  %v2297 = vsel %vm2242, %v2185, 0.0
  %2298 = vadd.xlane.f32.xlu0 %v2297
  %v2299 = vpop.xlane.xlu0 %2298
  %v2300 = vsel %vm2242, %v2186, 0.0
  %2301 = vadd.xlane.f32.xlu0 %v2300
  %v2302 = vpop.xlane.xlu0 %2301
  %v2303 = vsel %vm2242, %v2187, 0.0
  %2304 = vadd.xlane.f32.xlu0 %v2303
  %v2305 = vpop.xlane.xlu0 %2304
  %v2306 = vsel %vm2242, %v2188, 0.0
  %2307 = vadd.xlane.f32.xlu0 %v2306
  %v2308 = vpop.xlane.xlu0 %2307
  %v2309 = vsel %vm2242, %v2189, 0.0
  %2310 = vadd.xlane.f32.xlu0 %v2309
  %v2311 = vpop.xlane.xlu0 %2310
  %v2312 = vsel %vm2242, %v2190, 0.0
  %2313 = vadd.xlane.f32.xlu0 %v2312
  %v2314 = vpop.xlane.xlu0 %2313
  %v2315 = vsel %vm2242, %v2191, 0.0
  %2316 = vadd.xlane.f32.xlu0 %v2315
  %v2317 = vpop.xlane.xlu0 %2316
  %v2318 = vsel %vm2242, %v2192, 0.0
  %2319 = vadd.xlane.f32.xlu0 %v2318
  %v2320 = vpop.xlane.xlu0 %2319
  %v2321 = vsel %vm2242, %v2193, 0.0
  %2322 = vadd.xlane.f32.xlu0 %v2321
  %v2323 = vpop.xlane.xlu0 %2322
  %v2324 = vsel %vm2242, %v2194, 0.0
  %2325 = vadd.xlane.f32.xlu0 %v2324
  %v2326 = vpop.xlane.xlu0 %2325
  %v2327 = vsel %vm2242, %v2195, 0.0
  %2328 = vadd.xlane.f32.xlu0 %v2327
  %v2329 = vpop.xlane.xlu0 %2328
  %v2330 = vsel %vm2242, %v2196, 0.0
  %2331 = vadd.xlane.f32.xlu0 %v2330
  %v2332 = vpop.xlane.xlu0 %2331
  %v2333 = vsel %vm2242, %v2197, 0.0
  %2334 = vadd.xlane.f32.xlu0 %v2333
  %v2335 = vpop.xlane.xlu0 %2334
  %v2336 = vsel %vm2242, %v2198, 0.0
  %2337 = vadd.xlane.f32.xlu0 %v2336
  %v2338 = vpop.xlane.xlu0 %2337
  %v2339 = vsel %vm2242, %v2199, 0.0
  %2340 = vadd.xlane.f32.xlu0 %v2339
  %v2341 = vpop.xlane.xlu0 %2340
  %v2342 = vsel %vm2242, %v2200, 0.0
  %2343 = vadd.xlane.f32.xlu0 %v2342
  %v2344 = vpop.xlane.xlu0 %2343
  %v2345 = vsel %vm2242, %v2201, 0.0
  %2346 = vadd.xlane.f32.xlu0 %v2345
  %v2347 = vpop.xlane.xlu0 %2346
  %v2348 = vsel %vm2242, %v2202, 0.0
  %2349 = vadd.xlane.f32.xlu0 %v2348
  %v2350 = vpop.xlane.xlu0 %2349
  %v2351 = vsel %vm2242, %v2203, 0.0
  %2352 = vadd.xlane.f32.xlu0 %v2351
  %v2353 = vpop.xlane.xlu0 %2352
  %v2354 = vsel %vm2242, %v2204, 0.0
  %2355 = vadd.xlane.f32.xlu0 %v2354
  %v2356 = vpop.xlane.xlu0 %2355
  %v2357 = vsel %vm2242, %v2205, 0.0
  %2358 = vadd.xlane.f32.xlu0 %v2357
  %v2359 = vpop.xlane.xlu0 %2358
  %v2360 = vsel %vm2242, %v2206, 0.0
  %2361 = vadd.xlane.f32.xlu0 %v2360
  %v2362 = vpop.xlane.xlu0 %2361
  %v2363 = vsel %vm2242, %v2207, 0.0
  %2364 = vadd.xlane.f32.xlu0 %v2363
  %v2365 = vpop.xlane.xlu0 %2364
  %v2366 = vsel %vm2242, %v2208, 0.0
  %2367 = vadd.xlane.f32.xlu0 %v2366
  %v2368 = vpop.xlane.xlu0 %2367
  %v2369 = vsel %vm2242, %v2209, 0.0
  %2370 = vadd.xlane.f32.xlu0 %v2369
  %v2371 = vpop.xlane.xlu0 %2370
  %v2372 = vsel %vm2242, %v2210, 0.0
  %2373 = vadd.xlane.f32.xlu0 %v2372
  %v2374 = vpop.xlane.xlu0 %2373
  %v2375 = vsel %vm2242, %v2211, 0.0
  %2376 = vadd.xlane.f32.xlu0 %v2375
  %v2377 = vpop.xlane.xlu0 %2376
  %v2378 = vsel %vm2242, %v2212, 0.0
  %2379 = vadd.xlane.f32.xlu0 %v2378
  %v2380 = vpop.xlane.xlu0 %2379
  %v2381 = vsel %vm2242, %v2213, 0.0
  %2382 = vadd.xlane.f32.xlu0 %v2381
  %v2383 = vpop.xlane.xlu0 %2382
  %v2384 = vsel %vm2242, %v2214, 0.0
  %2385 = vadd.xlane.f32.xlu0 %v2384
  %v2386 = vpop.xlane.xlu0 %2385
  %v2387 = vsel %vm2242, %v2215, 0.0
  %2388 = vadd.xlane.f32.xlu0 %v2387
  %v2389 = vpop.xlane.xlu0 %2388
  %v2390 = vsel %vm2242, %v2216, 0.0
  %2391 = vadd.xlane.f32.xlu0 %v2390
  %v2392 = vpop.xlane.xlu0 %2391
  %v2393 = vsel %vm2242, %v2217, 0.0
  %2394 = vadd.xlane.f32.xlu0 %v2393
  %v2395 = vpop.xlane.xlu0 %2394
  %v2396 = vsel %vm2242, %v2218, 0.0
  %2397 = vadd.xlane.f32.xlu0 %v2396
  %v2398 = vpop.xlane.xlu0 %2397
  %v2399 = vsel %vm2242, %v2219, 0.0
  %2400 = vadd.xlane.f32.xlu0 %v2399
  %v2401 = vpop.xlane.xlu0 %2400
  %v2402 = vsel %vm2242, %v2220, 0.0
  %2403 = vadd.xlane.f32.xlu0 %v2402
  %v2404 = vpop.xlane.xlu0 %2403
  %v2405 = vsel %vm2242, %v2221, 0.0
  %2406 = vadd.xlane.f32.xlu0 %v2405
  %v2407 = vpop.xlane.xlu0 %2406
  %v2408 = vsel %vm2242, %v2222, 0.0
  %2409 = vadd.xlane.f32.xlu0 %v2408
  %v2410 = vpop.xlane.xlu0 %2409
  %v2411 = vsel %vm2242, %v2223, 0.0
  %2412 = vadd.xlane.f32.xlu0 %v2411
  %v2413 = vpop.xlane.xlu0 %2412
  %v2414 = vsel %vm2242, %v2224, 0.0
  %2415 = vadd.xlane.f32.xlu0 %v2414
  %v2416 = vpop.xlane.xlu0 %2415
  %v2417 = vsel %vm2242, %v2225, 0.0
  %2418 = vadd.xlane.f32.xlu0 %v2417
  %v2419 = vpop.xlane.xlu0 %2418
  %v2420 = vsel %vm2242, %v2226, 0.0
  %2421 = vadd.xlane.f32.xlu0 %v2420
  %v2422 = vpop.xlane.xlu0 %2421
  %v2423 = vsel %vm2242, %v2227, 0.0
  %2424 = vadd.xlane.f32.xlu0 %v2423
  %v2425 = vpop.xlane.xlu0 %2424
  %v2426 = vsel %vm2242, %v2228, 0.0
  %2427 = vadd.xlane.f32.xlu0 %v2426
  %v2428 = vpop.xlane.xlu0 %2427
  %v2429 = vsel %vm2242, %v2229, 0.0
  %2430 = vadd.xlane.f32.xlu0 %v2429
  %v2431 = vpop.xlane.xlu0 %2430
  %v2432 = vsel %vm2242, %v2230, 0.0
  %2433 = vadd.xlane.f32.xlu0 %v2432
  %v2434 = vpop.xlane.xlu0 %2433
  %v2435 = vsel %vm2242, %v2231, 0.0
  %2436 = vadd.xlane.f32.xlu0 %v2435
  %v2437 = vpop.xlane.xlu0 %2436
  %v2438 = vsel %vm2242, %v2232, 0.0
  %2439 = vadd.xlane.f32.xlu0 %v2438
  %v2440 = vpop.xlane.xlu0 %2439
  %v2441 = vsel %vm2242, %v2233, 0.0
  %2442 = vadd.xlane.f32.xlu0 %v2441
  %v2443 = vpop.xlane.xlu0 %2442
  %v2444 = vsel %vm2242, %v2234, 0.0
  %2445 = vadd.xlane.f32.xlu0 %v2444
  %v2446 = vpop.xlane.xlu0 %2445
  %v2447 = vsel %vm2242, %v2235, 0.0
  %2448 = vadd.xlane.f32.xlu0 %v2447
  %v2449 = vpop.xlane.xlu0 %2448
  %v2450 = vsel %vm2242, %v2236, 0.0
  %2451 = vadd.xlane.f32.xlu0 %v2450
  %v2452 = vpop.xlane.xlu0 %2451
  %v2453 = vsel %vm2242, %v2237, 0.0
  %2454 = vadd.xlane.f32.xlu0 %v2453
  %v2455 = vpop.xlane.xlu0 %2454
  %v2456 = vsel %vm2242, %v2238, 0.0
  %2457 = vadd.xlane.f32.xlu0 %v2456
  %v2458 = vpop.xlane.xlu0 %2457
  %v2459 = vsel %vm2242, %v2239, 0.0
  %2460 = vadd.xlane.f32.xlu0 %v2459
  %v2461 = vpop.xlane.xlu0 %2460
  %v2462 = vsel %vm2242, %v2240, 0.0
  %2463 = vadd.xlane.f32.xlu0 %v2462
  %v2464 = vpop.xlane.xlu0 %2463
  %v2465 = vsel %vm2242, %v2241, 0.0
  %2466 = vadd.xlane.f32.xlu0 %v2465
  %v2467 = vpop.xlane.xlu0 %2466
  %v2468 = vld [vmem:[#allocation2] sm:$0x1]
  %v2470 = vlaneseq
  %v2471 = vshrl.u32 %v2470, 7
  %v2472 = vsub.s32 0, %v2471
  %v2473 = vrot.slane %v2468, %v2472
  %v2475 = vadd.f32 %v2245, %v2473
  %v2476 = vadd.f32 %v2248, %v2473
  %v2477 = vadd.f32 %v2251, %v2473
  %v2478 = vadd.f32 %v2254, %v2473
  %v2479 = vadd.f32 %v2257, %v2473
  %v2480 = vadd.f32 %v2260, %v2473
  %v2481 = vadd.f32 %v2263, %v2473
  %v2482 = vadd.f32 %v2266, %v2473
  %v2483 = vadd.f32 %v2269, %v2473
  %v2484 = vadd.f32 %v2272, %v2473
  %v2485 = vadd.f32 %v2275, %v2473
  %v2486 = vadd.f32 %v2278, %v2473
  %v2487 = vadd.f32 %v2281, %v2473
  %v2488 = vadd.f32 %v2284, %v2473
  %v2489 = vadd.f32 %v2287, %v2473
  %v2490 = vadd.f32 %v2290, %v2473
  %v2491 = vadd.f32 %v2293, %v2473
  %v2492 = vadd.f32 %v2296, %v2473
  %v2493 = vadd.f32 %v2299, %v2473
  %v2494 = vadd.f32 %v2302, %v2473
  %v2495 = vadd.f32 %v2305, %v2473
  %v2496 = vadd.f32 %v2308, %v2473
  %v2497 = vadd.f32 %v2311, %v2473
  %v2498 = vadd.f32 %v2314, %v2473
  %v2499 = vadd.f32 %v2317, %v2473
  %v2500 = vadd.f32 %v2320, %v2473
  %v2501 = vadd.f32 %v2323, %v2473
  %v2502 = vadd.f32 %v2326, %v2473
  %v2503 = vadd.f32 %v2329, %v2473
  %v2504 = vadd.f32 %v2332, %v2473
  %v2505 = vadd.f32 %v2335, %v2473
  %v2506 = vadd.f32 %v2338, %v2473
  %v2507 = vadd.f32 %v2341, %v2473
  %v2508 = vadd.f32 %v2344, %v2473
  %v2509 = vadd.f32 %v2347, %v2473
  %v2510 = vadd.f32 %v2350, %v2473
  %v2511 = vadd.f32 %v2353, %v2473
  %v2512 = vadd.f32 %v2356, %v2473
  %v2513 = vadd.f32 %v2359, %v2473
  %v2514 = vadd.f32 %v2362, %v2473
  %v2515 = vadd.f32 %v2365, %v2473
  %v2516 = vadd.f32 %v2368, %v2473
  %v2517 = vadd.f32 %v2371, %v2473
  %v2518 = vadd.f32 %v2374, %v2473
  %v2519 = vadd.f32 %v2377, %v2473
  %v2520 = vadd.f32 %v2380, %v2473
  %v2521 = vadd.f32 %v2383, %v2473
  %v2522 = vadd.f32 %v2386, %v2473
  %v2523 = vadd.f32 %v2389, %v2473
  %v2524 = vadd.f32 %v2392, %v2473
  %v2525 = vadd.f32 %v2395, %v2473
  %v2526 = vadd.f32 %v2398, %v2473
  %v2527 = vadd.f32 %v2401, %v2473
  %v2528 = vadd.f32 %v2404, %v2473
  %v2529 = vadd.f32 %v2407, %v2473
  %v2530 = vadd.f32 %v2410, %v2473
  %v2531 = vadd.f32 %v2413, %v2473
  %v2532 = vadd.f32 %v2416, %v2473
  %v2533 = vadd.f32 %v2419, %v2473
  %v2534 = vadd.f32 %v2422, %v2473
  %v2535 = vadd.f32 %v2425, %v2473
  %v2536 = vadd.f32 %v2428, %v2473
  %v2537 = vadd.f32 %v2431, %v2473
  %v2538 = vadd.f32 %v2434, %v2473
  %v2539 = vadd.f32 %v2437, %v2473
  %v2540 = vadd.f32 %v2440, %v2473
  %v2541 = vadd.f32 %v2443, %v2473
  %v2542 = vadd.f32 %v2446, %v2473
  %v2543 = vadd.f32 %v2449, %v2473
  %v2544 = vadd.f32 %v2452, %v2473
  %v2545 = vadd.f32 %v2455, %v2473
  %v2546 = vadd.f32 %v2458, %v2473
  %v2547 = vadd.f32 %v2461, %v2473
  %v2548 = vadd.f32 %v2464, %v2473
  %v2549 = vadd.f32 %v2467, %v2473
  %vm2550 = vcmask 7168
  %2551 = vst.msk [vmem:[%s9] sm:$0xff] %vm2550, %v2475
  %2552 = vst.msk [vmem:[%s9 + $0x8] sm:$0xff] %vm2550, %v2476
  %2553 = vst.msk [vmem:[%s9 + $0x10] sm:$0xff] %vm2550, %v2477
  %2554 = vst.msk [vmem:[%s9 + $0x18] sm:$0xff] %vm2550, %v2478
  %2555 = vst.msk [vmem:[%s9 + $0x20] sm:$0xff] %vm2550, %v2479
  %2556 = vst.msk [vmem:[%s9 + $0x28] sm:$0xff] %vm2550, %v2480
  %2557 = vst.msk [vmem:[%s9 + $0x30] sm:$0xff] %vm2550, %v2481
  %2558 = vst.msk [vmem:[%s9 + $0x38] sm:$0xff] %vm2550, %v2482
  %2559 = vst.msk [vmem:[%s9 + $0x40] sm:$0xff] %vm2550, %v2483
  %2560 = vst.msk [vmem:[%s9 + $0x48] sm:$0xff] %vm2550, %v2484
  %2561 = vst.msk [vmem:[%s9 + $0x50] sm:$0xff] %vm2550, %v2485
  %2562 = vst.msk [vmem:[%s9 + $0x58] sm:$0xff] %vm2550, %v2486
  %2563 = vst.msk [vmem:[%s9 + $0x60] sm:$0xff] %vm2550, %v2487
  %2564 = vst.msk [vmem:[%s9 + $0x68] sm:$0xff] %vm2550, %v2488
  %2565 = vst.msk [vmem:[%s9 + $0x70] sm:$0xff] %vm2550, %v2489
  %2566 = vst.msk [vmem:[%s9 + $0x78] sm:$0xff] %vm2550, %v2490
  %2567 = vst.msk [vmem:[%s9 + $0x80] sm:$0xff] %vm2550, %v2491
  %2568 = vst.msk [vmem:[%s9 + $0x88] sm:$0xff] %vm2550, %v2492
  %2569 = vst.msk [vmem:[%s9 + $0x90] sm:$0xff] %vm2550, %v2493
  %2570 = vst.msk [vmem:[%s9 + $0x98] sm:$0xff] %vm2550, %v2494
  %2571 = vst.msk [vmem:[%s9 + $0xa0] sm:$0xff] %vm2550, %v2495
  %2572 = vst.msk [vmem:[%s9 + $0xa8] sm:$0xff] %vm2550, %v2496
  %2573 = vst.msk [vmem:[%s9 + $0xb0] sm:$0xff] %vm2550, %v2497
  %2574 = vst.msk [vmem:[%s9 + $0xb8] sm:$0xff] %vm2550, %v2498
  %2575 = vst.msk [vmem:[%s9 + $0xc0] sm:$0xff] %vm2550, %v2499
  %2576 = vst.msk [vmem:[%s9 + $0xc8] sm:$0xff] %vm2550, %v2500
  %2577 = vst.msk [vmem:[%s9 + $0xd0] sm:$0xff] %vm2550, %v2501
  %2578 = vst.msk [vmem:[%s9 + $0xd8] sm:$0xff] %vm2550, %v2502
  %2579 = vst.msk [vmem:[%s9 + $0xe0] sm:$0xff] %vm2550, %v2503
  %2580 = vst.msk [vmem:[%s9 + $0xe8] sm:$0xff] %vm2550, %v2504
  %2581 = vst.msk [vmem:[%s9 + $0xf0] sm:$0xff] %vm2550, %v2505
  %2582 = vst.msk [vmem:[%s9 + $0xf8] sm:$0xff] %vm2550, %v2506
  %2583 = vst.msk [vmem:[%s9 + $0x100] sm:$0xff] %vm2550, %v2507
  %2584 = vst.msk [vmem:[%s9 + $0x108] sm:$0xff] %vm2550, %v2508
  %2585 = vst.msk [vmem:[%s9 + $0x110] sm:$0xff] %vm2550, %v2509
  %2586 = vst.msk [vmem:[%s9 + $0x118] sm:$0xff] %vm2550, %v2510
  %2587 = vst.msk [vmem:[%s9 + $0x120] sm:$0xff] %vm2550, %v2511
  %2588 = vst.msk [vmem:[%s9 + $0x128] sm:$0xff] %vm2550, %v2512
  %2589 = vst.msk [vmem:[%s9 + $0x130] sm:$0xff] %vm2550, %v2513
  %2590 = vst.msk [vmem:[%s9 + $0x138] sm:$0xff] %vm2550, %v2514
  %2591 = vst.msk [vmem:[%s9 + $0x140] sm:$0xff] %vm2550, %v2515
  %2592 = vst.msk [vmem:[%s9 + $0x148] sm:$0xff] %vm2550, %v2516
  %2593 = vst.msk [vmem:[%s9 + $0x150] sm:$0xff] %vm2550, %v2517
  %2594 = vst.msk [vmem:[%s9 + $0x158] sm:$0xff] %vm2550, %v2518
  %2595 = vst.msk [vmem:[%s9 + $0x160] sm:$0xff] %vm2550, %v2519
  %2596 = vst.msk [vmem:[%s9 + $0x168] sm:$0xff] %vm2550, %v2520
  %2597 = vst.msk [vmem:[%s9 + $0x170] sm:$0xff] %vm2550, %v2521
  %2598 = vst.msk [vmem:[%s9 + $0x178] sm:$0xff] %vm2550, %v2522
  %2599 = vst.msk [vmem:[%s9 + $0x180] sm:$0xff] %vm2550, %v2523
  %2600 = vst.msk [vmem:[%s9 + $0x188] sm:$0xff] %vm2550, %v2524
  %2601 = vst.msk [vmem:[%s9 + $0x190] sm:$0xff] %vm2550, %v2525
  %2602 = vst.msk [vmem:[%s9 + $0x198] sm:$0xff] %vm2550, %v2526
  %2603 = vst.msk [vmem:[%s9 + $0x1a0] sm:$0xff] %vm2550, %v2527
  %2604 = vst.msk [vmem:[%s9 + $0x1a8] sm:$0xff] %vm2550, %v2528
  %2605 = vst.msk [vmem:[%s9 + $0x1b0] sm:$0xff] %vm2550, %v2529
  %2606 = vst.msk [vmem:[%s9 + $0x1b8] sm:$0xff] %vm2550, %v2530
  %2607 = vst.msk [vmem:[%s9 + $0x1c0] sm:$0xff] %vm2550, %v2531
  %2608 = vst.msk [vmem:[%s9 + $0x1c8] sm:$0xff] %vm2550, %v2532
  %2609 = vst.msk [vmem:[%s9 + $0x1d0] sm:$0xff] %vm2550, %v2533
  %2610 = vst.msk [vmem:[%s9 + $0x1d8] sm:$0xff] %vm2550, %v2534
  %2611 = vst.msk [vmem:[%s9 + $0x1e0] sm:$0xff] %vm2550, %v2535
  %2612 = vst.msk [vmem:[%s9 + $0x1e8] sm:$0xff] %vm2550, %v2536
  %2613 = vst.msk [vmem:[%s9 + $0x1f0] sm:$0xff] %vm2550, %v2537
  %2614 = vst.msk [vmem:[%s9 + $0x1f8] sm:$0xff] %vm2550, %v2538
  %2615 = vst.msk [vmem:[%s9 + $0x200] sm:$0xff] %vm2550, %v2539
  %2616 = vst.msk [vmem:[%s9 + $0x208] sm:$0xff] %vm2550, %v2540
  %2617 = vst.msk [vmem:[%s9 + $0x210] sm:$0xff] %vm2550, %v2541
  %2618 = vst.msk [vmem:[%s9 + $0x218] sm:$0xff] %vm2550, %v2542
  %2619 = vst.msk [vmem:[%s9 + $0x220] sm:$0xff] %vm2550, %v2543
  %2620 = vst.msk [vmem:[%s9 + $0x228] sm:$0xff] %vm2550, %v2544
  %2621 = vst.msk [vmem:[%s9 + $0x230] sm:$0xff] %vm2550, %v2545
  %2622 = vst.msk [vmem:[%s9 + $0x238] sm:$0xff] %vm2550, %v2546
  %2623 = vst.msk [vmem:[%s9 + $0x240] sm:$0xff] %vm2550, %v2547
  %2624 = vst.msk [vmem:[%s9 + $0x248] sm:$0xff] %vm2550, %v2548
  %2625 = vst.msk [vmem:[%s9 + $0x250] sm:$0xff] %vm2550, %v2549
  // Predicated region
  $region38: #{tpu_custom_call.1} parent=0 // pred_check
    _
  $region39: #{tpu_custom_call.1} parent=0 // pred_check_branch
    %2627 = sbr.rel (0) target = $region41
  $region40: #{tpu_custom_call.1} parent=0 // pred_region
    _
  $region41: #{tpu_custom_call.1} parent=0 // pred_fallthru
    _
  // Predicated region
  $region42: #{tpu_custom_call.1} parent=0 // pred_check
    _
  $region43: #{tpu_custom_call.1} parent=0 // pred_check_branch
    %2629 = sbr.rel (0) target = $region45
  $region44: #{tpu_custom_call.1} parent=0 // pred_region
    _
  $region45: #{tpu_custom_call.1} parent=0 // pred_fallthru
    _

</llo_original>
